<compile_context>
chip_gen: v6e
topology: v6e:2x2x1
jax: 0.10.0
libtpu: 0.0.40
codegen_flags: <defaults>
</compile_context>

<pallas_src>
import functools

import jax
import jax.numpy as jnp
from jax import lax
from jax.experimental import pallas as pl
from jax.experimental.pallas import tpu as pltpu

F32 = jnp.float32
BF16 = jnp.bfloat16

_VMEM_LIMIT = 64 * 1024 * 1024   # raised from 32 MiB; <= v7x physical, ample on v5e/v6e


def _cparams(ngrid):
    return pltpu.CompilerParams(
        dimension_semantics=("parallel",) * ngrid,
        vmem_limit_bytes=_VMEM_LIMIT,
    )


def _row_tile(m, target=512):
    """Largest multiple-of-8 divisor of m that is <= target (else m itself)."""
    if m <= target:
        return m
    t = target - (target % 8)
    for cand in range(t, 7, -8):
        if m % cand == 0:
            return cand
    return m


def _stripe_rows(h):
    """Row-stripe height: largest divisor of h that is <= max(8, h // 4)."""
    target = max(8, h // 4)
    if h <= target:
        return h
    for cand in range(target, 0, -1):
        if h % cand == 0:
            return cand
    return h


# ----------------------------------------------------------------------------
# Fused 3x3 conv + BN affine (+ReLU): row-striped (halo) grid, 9 shifted matmuls,
# bf16 input block (single cast, outside the tap loop), f32 accumulation.
# ----------------------------------------------------------------------------
def _conv3x3_kernel(xs_ref, w_ref, s_ref, b_ref, o_ref, *, TH, W, relu):
    xp = xs_ref[0]                                    # (TH+2, W+2, Cin) bf16
    cin = xp.shape[-1]
    cout = w_ref.shape[-1]
    acc = jnp.zeros((TH * W, cout), F32)
    for kh in range(3):
        for kw in range(3):
            patch = xp[kh:kh + TH, kw:kw + W, :].reshape(TH * W, cin)
            acc = acc + jnp.dot(patch, w_ref[kh * 3 + kw],
                                preferred_element_type=F32)
    y = acc * s_ref[...] + b_ref[...]
    if relu:
        y = jnp.maximum(y, 0.0)
    o_ref[0] = y.reshape(TH, W, cout).astype(o_ref.dtype)


def conv3x3_bn_act(x, w9, scale, bias, relu=True, out_dtype=BF16):
    """x: (B,H,W,Cin); w9: (9,Cin,Cout) (tap order kh-major, kw-minor)."""
    B, H, W, Cin = x.shape
    Cout = w9.shape[-1]
    TH = _stripe_rows(H)
    S = H // TH
    xp = jnp.pad(x.astype(BF16), ((0, 0), (1, 1), (1, 1), (0, 0)))   # bf16 pad
    # Overlapping halo'd row stripes: (B*S, TH+2, W+2, Cin).
    stripes = jnp.stack([xp[:, s * TH:s * TH + TH + 2] for s in range(S)],
                        axis=1).reshape(B * S, TH + 2, W + 2, Cin)
    kern = functools.partial(_conv3x3_kernel, TH=TH, W=W, relu=relu)
    out = pl.pallas_call(
        kern,
        grid=(B * S,),
        in_specs=[
            pl.BlockSpec((1, TH + 2, W + 2, Cin), lambda i: (i, 0, 0, 0)),
            pl.BlockSpec((9, Cin, Cout), lambda i: (0, 0, 0)),
            pl.BlockSpec((1, Cout), lambda i: (0, 0)),
            pl.BlockSpec((1, Cout), lambda i: (0, 0)),
        ],
        out_specs=pl.BlockSpec((1, TH, W, Cout), lambda i: (i, 0, 0, 0)),
        out_shape=jax.ShapeDtypeStruct((B * S, TH, W, Cout), out_dtype),
        compiler_params=_cparams(1),
    )(stripes, w9.astype(BF16),
      scale.reshape(1, Cout).astype(F32), bias.reshape(1, Cout).astype(F32))
    return out.reshape(B, H, W, Cout)


# ----------------------------------------------------------------------------
# Depthwise 3x3 stride-2 conv + BN (scale folded into taps), bf16 parity planes.
# ----------------------------------------------------------------------------
def _dw_s2_kernel(ee_ref, eo_ref, oe_ref, oo_ref, w_ref, b_ref, o_ref, *, Ho, Wo):
    ee = ee_ref[0].astype(F32)
    eo = eo_ref[0].astype(F32)
    oe = oe_ref[0].astype(F32)
    oo = oo_ref[0].astype(F32)
    taps = (
        ee[0:Ho, 0:Wo], eo[0:Ho, 0:Wo], ee[0:Ho, 1:Wo + 1],
        oe[0:Ho, 0:Wo], oo,             oe[0:Ho, 1:Wo + 1],
        ee[1:Ho + 1, 0:Wo], eo[1:Ho + 1, 0:Wo], ee[1:Ho + 1, 1:Wo + 1],
    )
    acc = taps[0] * w_ref[0]
    for k in range(1, 9):
        acc = acc + taps[k] * w_ref[k]
    o_ref[0] = (acc + b_ref[...]).astype(o_ref.dtype)


def dw_conv_s2(x, w, bias):
    """x: (B,H,W,C); w: (9,1,1,C) with BN scale folded; bias: (1,1,C)."""
    B, H, W, C = x.shape
    xp = jnp.pad(x.astype(BF16), ((0, 0), (1, 1), (1, 1), (0, 0)))
    Ho = (H - 1) // 2 + 1
    Wo = (W - 1) // 2 + 1
    ee = xp[:, 0::2, 0::2, :][:, :Ho + 1, :Wo + 1, :]
    eo = xp[:, 0::2, 1::2, :][:, :Ho + 1, :Wo, :]
    oe = xp[:, 1::2, 0::2, :][:, :Ho, :Wo + 1, :]
    oo = xp[:, 1::2, 1::2, :][:, :Ho, :Wo, :]
    kern = functools.partial(_dw_s2_kernel, Ho=Ho, Wo=Wo)
    return pl.pallas_call(
        kern,
        grid=(B,),
        in_specs=[
            pl.BlockSpec((1, Ho + 1, Wo + 1, C), lambda b: (b, 0, 0, 0)),
            pl.BlockSpec((1, Ho + 1, Wo, C), lambda b: (b, 0, 0, 0)),
            pl.BlockSpec((1, Ho, Wo + 1, C), lambda b: (b, 0, 0, 0)),
            pl.BlockSpec((1, Ho, Wo, C), lambda b: (b, 0, 0, 0)),
            pl.BlockSpec((9, 1, 1, C), lambda b: (0, 0, 0, 0)),
            pl.BlockSpec((1, 1, C), lambda b: (0, 0, 0)),
        ],
        out_specs=pl.BlockSpec((1, Ho, Wo, C), lambda b: (b, 0, 0, 0)),
        out_shape=jax.ShapeDtypeStruct((B, Ho, Wo, C), BF16),
        compiler_params=_cparams(1),
    )(ee, eo, oe, oo, w.astype(F32), bias.astype(F32))


# ----------------------------------------------------------------------------
# Fused SpatialGCN (y=None): QKV proj + attention + conv_wg + out conv + residual + ReLU.
# All dots are bf16 MXU with f32 accumulation.
# ----------------------------------------------------------------------------
def _sgcn_kernel(x_ref, wqkv_ref, bqkv_ref, wwg_ref, swg_ref, bwg_ref,
                 wo_ref, so_ref, bo_ref, o_ref, *, c2):
    x = x_ref[0]                                              # (hw, P) bf16
    qkv = jnp.dot(x, wqkv_ref[...], preferred_element_type=F32) + bqkv_ref[...]
    nk = qkv[:, 0:c2]
    nv = qkv[:, c2:2 * c2]
    nq = qkv[:, 2 * c2:3 * c2]
    # AV = node_q @ node_v  (contract the hw axis; transposed-LHS matmul)
    s = lax.dot_general(nq.astype(BF16), nv.astype(BF16),
                        (((0,), (0,)), ((), ())), preferred_element_type=F32)  # (c2,c2)
    s = s - jnp.max(s, axis=-1, keepdims=True)
    p = jnp.exp(s)
    a = p * pl.reciprocal(jnp.sum(p, axis=-1, keepdims=True), approx=True)
    av = jnp.dot(nk.astype(BF16), a.astype(BF16), preferred_element_type=F32)  # (hw,c2)
    avw = (jnp.dot(av.astype(BF16), wwg_ref[...], preferred_element_type=F32)
           * swg_ref[...] + bwg_ref[...])
    out = (jnp.dot(avw.astype(BF16), wo_ref[...], preferred_element_type=F32)
           * so_ref[...] + bo_ref[...] + x.astype(F32))
    o_ref[0] = jnp.maximum(out, 0.0).astype(o_ref.dtype)


def spatial_gcn(loc, wqkv, bqkv, wwgT, wg_s, wg_b, wout, out_s, out_b, c2):
    B, hw, P = loc.shape
    kern = functools.partial(_sgcn_kernel, c2=c2)
    return pl.pallas_call(
        kern,
        grid=(B,),
        in_specs=[
            pl.BlockSpec((1, hw, P), lambda b: (b, 0, 0)),
            pl.BlockSpec((P, 3 * c2), lambda b: (0, 0)),
            pl.BlockSpec((1, 3 * c2), lambda b: (0, 0)),
            pl.BlockSpec((c2, c2), lambda b: (0, 0)),
            pl.BlockSpec((1, c2), lambda b: (0, 0)),
            pl.BlockSpec((1, c2), lambda b: (0, 0)),
            pl.BlockSpec((c2, P), lambda b: (0, 0)),
            pl.BlockSpec((1, P), lambda b: (0, 0)),
            pl.BlockSpec((1, P), lambda b: (0, 0)),
        ],
        out_specs=pl.BlockSpec((1, hw, P), lambda b: (b, 0, 0)),
        out_shape=jax.ShapeDtypeStruct((B, hw, P), BF16),
        compiler_params=_cparams(1),
    )(loc.astype(BF16), wqkv.astype(BF16), bqkv.reshape(1, 3 * c2).astype(F32),
      wwgT.astype(BF16), wg_s.reshape(1, c2).astype(F32), wg_b.reshape(1, c2).astype(F32),
      wout.astype(BF16), out_s.reshape(1, P).astype(F32), out_b.reshape(1, P).astype(F32))


# ----------------------------------------------------------------------------
# Separable bilinear upsample (align_corners=True) fused with x*local + x,
# row-striped over a 2-D (B, stripes) parallel grid.
# ----------------------------------------------------------------------------
def _interp_matrix(n_out, n_in):
    if n_in == 1:
        return jnp.ones((n_out, 1), F32)
    pos = jnp.arange(n_out, dtype=F32) * (n_in - 1) / max(n_out - 1, 1)
    i0 = jnp.clip(jnp.floor(pos).astype(jnp.int32), 0, n_in - 1)
    i1 = jnp.clip(i0 + 1, 0, n_in - 1)
    f = pos - i0.astype(F32)
    R = jnp.zeros((n_out, n_in), F32)
    rows = jnp.arange(n_out)
    R = R.at[rows, i0].add(1.0 - f)
    R = R.at[rows, i1].add(f)
    return R


def _up_muladd_kernel(lg_ref, x_ref, rhc_ref, rw_ref, o_ref, *, hh):
    rw = rw_ref[...]                                          # (W, ww) bf16
    lg = lg_ref[0]                                            # (hh, ww, P) bf16
    x = x_ref[0].astype(F32)                                  # (TH, W, P)
    up = jnp.zeros(x.shape, F32)
    for a in range(hh):
        ya = jnp.dot(rw, lg[a], preferred_element_type=F32)   # (W, P) on the MXU
        up = up + rhc_ref[a] * ya[None, :, :]                 # (TH,1,1)*(1,W,P)
    o_ref[0] = (x * up + x).astype(o_ref.dtype)


def upsample_muladd(local_gcn, x_img):
    """local_gcn: (B,hh,ww,P); x_img: (B,H,W,P) -> x*up(local)+x : (B,H,W,P) bf16."""
    B, hh, ww, P = local_gcn.shape
    _, H, W, _ = x_img.shape
    TH = _stripe_rows(H)
    S = H // TH
    Rh = _interp_matrix(H, hh)                                 # (H, hh)
    Rw = _interp_matrix(W, ww)                                 # (W, ww)
    rh_cols = jnp.transpose(Rh).reshape(hh, H, 1, 1)           # rh_cols[a, i] = Rh[i, a]
    kern = functools.partial(_up_muladd_kernel, hh=hh)
    return pl.pallas_call(
        kern,
        grid=(B, S),
        in_specs=[
            pl.BlockSpec((1, hh, ww, P), lambda b, s: (b, 0, 0, 0)),
            pl.BlockSpec((1, TH, W, P), lambda b, s: (b, s, 0, 0)),
            pl.BlockSpec((hh, TH, 1, 1), lambda b, s: (0, s, 0, 0)),
            pl.BlockSpec((W, ww), lambda b, s: (0, 0)),
        ],
        out_specs=pl.BlockSpec((1, TH, W, P), lambda b, s: (b, s, 0, 0)),
        out_shape=jax.ShapeDtypeStruct((B, H, W, P), BF16),
        compiler_params=_cparams(2),
    )(local_gcn.astype(BF16), x_img.astype(BF16),
      rh_cols.astype(F32), Rw.astype(BF16))


# ----------------------------------------------------------------------------
# Row-tiled matmul + BN affine (+ReLU): used for the fused phi/theta projection.
# ----------------------------------------------------------------------------
def _mm_bn_kernel(x_ref, w_ref, s_ref, b_ref, o_ref, *, relu):
    y = jnp.dot(x_ref[...], w_ref[...], preferred_element_type=F32)
    y = y * s_ref[...] + b_ref[...]
    if relu:
        y = jnp.maximum(y, 0.0)
    o_ref[...] = y.astype(o_ref.dtype)


def mm_bn_act(x, w, scale, bias, relu=False, tm=512):
    M, K = x.shape
    N = w.shape[1]
    TM = _row_tile(M, tm)
    return pl.pallas_call(
        functools.partial(_mm_bn_kernel, relu=relu),
        grid=(M // TM,),
        in_specs=[
            pl.BlockSpec((TM, K), lambda i: (i, 0)),
            pl.BlockSpec((K, N), lambda i: (0, 0)),
            pl.BlockSpec((1, N), lambda i: (0, 0)),
            pl.BlockSpec((1, N), lambda i: (0, 0)),
        ],
        out_specs=pl.BlockSpec((TM, N), lambda i: (i, 0)),
        out_shape=jax.ShapeDtypeStruct((M, N), BF16),
        compiler_params=_cparams(1),
    )(x.astype(BF16), w.astype(BF16),
      scale.reshape(1, N).astype(F32), bias.reshape(1, N).astype(F32))


# ----------------------------------------------------------------------------
# Per-batch graph reasoning (conv_adj/bn_adj residual, conv_wg/bn_wg, y = z @ b).
# ----------------------------------------------------------------------------
def _graph_kernel(pt_ref, wadj_ref, sa_ref, ba_ref, wwg_ref, sw_ref, bw_ref,
                  o_ref, *, c2):
    pt = pt_ref[0]                                            # (HW, c2+c4) bf16
    xr = pt[:, :c2]                                           # = x_sqz^T  (HW, c2)
    br = pt[:, c2:]                                           # = b^T      (HW, c4)
    # z_idt^T = b @ x_sqz^T  (contract the HW axis; transposed-LHS matmul)
    z_idt_t = lax.dot_general(br, xr, (((0,), (0,)), ((), ())),
                              preferred_element_type=F32)     # (c4, c2)
    adj = jnp.dot(wadj_ref[...], z_idt_t.astype(BF16), preferred_element_type=F32)
    zz = z_idt_t + adj * sa_ref[...] + ba_ref[...]            # residual after BN
    z2 = (jnp.dot(zz.astype(BF16), wwg_ref[...], preferred_element_type=F32)
          * sw_ref[...] + bw_ref[...])
    y_t = jnp.dot(br, z2.astype(BF16), preferred_element_type=F32)  # (HW, c2)
    o_ref[0] = y_t.astype(o_ref.dtype)


def graph_reasoning(pt, c2, c4, wadj, adj_s, adj_b, wwgT, wg_s, wg_b):
    B, HW, _ = pt.shape
    kern = functools.partial(_graph_kernel, c2=c2)
    return pl.pallas_call(
        kern,
        grid=(B,),
        in_specs=[
            pl.BlockSpec((1, HW, c2 + c4), lambda b: (b, 0, 0)),
            pl.BlockSpec((c4, c4), lambda b: (0, 0)),
            pl.BlockSpec((c4, 1), lambda b: (0, 0)),
            pl.BlockSpec((c4, 1), lambda b: (0, 0)),
            pl.BlockSpec((c2, c2), lambda b: (0, 0)),
            pl.BlockSpec((1, c2), lambda b: (0, 0)),
            pl.BlockSpec((1, c2), lambda b: (0, 0)),
        ],
        out_specs=pl.BlockSpec((1, HW, c2), lambda b: (b, 0, 0)),
        out_shape=jax.ShapeDtypeStruct((B, HW, c2), BF16),
        compiler_params=_cparams(1),
    )(pt.astype(BF16), wadj.astype(BF16),
      adj_s.reshape(c4, 1).astype(F32), adj_b.reshape(c4, 1).astype(F32),
      wwgT.astype(BF16), wg_s.reshape(1, c2).astype(F32), wg_b.reshape(1, c2).astype(F32))


# ----------------------------------------------------------------------------
# Fused tail: g_out = relu(x + bn3(conv3(y))); final 1x1 conv + BN on concat
# (spatial_local_feat, g_out) done as two split matmuls (no HBM concat).
# ----------------------------------------------------------------------------
def _tail_kernel(slf_ref, o1_ref, yr_ref, w3_ref, s3_ref, b3_ref,
                 wt_ref, wb_ref, sf_ref, bf_ref, o_ref):
    g = jnp.dot(yr_ref[...], w3_ref[...], preferred_element_type=F32)
    g = jnp.maximum(g * s3_ref[...] + b3_ref[...] + o1_ref[...].astype(F32), 0.0)
    cfg = (jnp.dot(slf_ref[...], wt_ref[...], preferred_element_type=F32)
           + jnp.dot(g.astype(BF16), wb_ref[...], preferred_element_type=F32))
    o_ref[...] = (cfg * sf_ref[...] + bf_ref[...]).astype(o_ref.dtype)


def fused_tail(slf, o1, yr, w3, s3, b3, wtop, wbot, sf, bfin, tm=512):
    M, P = o1.shape
    C2 = yr.shape[1]
    TM = _row_tile(M, tm)
    return pl.pallas_call(
        _tail_kernel,
        grid=(M // TM,),
        in_specs=[
            pl.BlockSpec((TM, P), lambda i: (i, 0)),
            pl.BlockSpec((TM, P), lambda i: (i, 0)),
            pl.BlockSpec((TM, C2), lambda i: (i, 0)),
            pl.BlockSpec((C2, P), lambda i: (0, 0)),
            pl.BlockSpec((1, P), lambda i: (0, 0)),
            pl.BlockSpec((1, P), lambda i: (0, 0)),
            pl.BlockSpec((P, P), lambda i: (0, 0)),
            pl.BlockSpec((P, P), lambda i: (0, 0)),
            pl.BlockSpec((1, P), lambda i: (0, 0)),
            pl.BlockSpec((1, P), lambda i: (0, 0)),
        ],
        out_specs=pl.BlockSpec((TM, P), lambda i: (i, 0)),
        out_shape=jax.ShapeDtypeStruct((M, P), BF16),
        compiler_params=_cparams(1),
    )(slf.astype(BF16), o1.astype(BF16), yr.astype(BF16),
      w3.astype(BF16), s3.reshape(1, P).astype(F32), b3.reshape(1, P).astype(F32),
      wtop.astype(BF16), wbot.astype(BF16),
      sf.reshape(1, P).astype(F32), bfin.reshape(1, P).astype(F32))


# ----------------------------------------------------------------------------
# Deterministic parameter construction
# ----------------------------------------------------------------------------
class Rng:
    def __init__(self, seed):
        self.key = jax.random.PRNGKey(seed)

    def next(self):
        self.key, sub = jax.random.split(self.key)
        return sub


def randn(rng, shape, scale=0.1):
    return scale * jax.random.normal(rng.next(), shape, dtype=F32)


def bn_affine(rng, c, eps=1e-5):
    gamma = 1.0 + randn(rng, (c,), 0.05)
    beta = randn(rng, (c,), 0.05)
    mean = randn(rng, (c,), 0.05)
    var = 1.0 + jnp.abs(randn(rng, (c,), 0.05))
    scale = gamma / jnp.sqrt(var + eps)
    bias = beta - mean * scale
    return scale, bias


def init_params(inplanes, interplanes, rng):
    P, C2, C4 = interplanes, interplanes // 2, interplanes // 4
    p = {"P": P}
    # conva: 3x3 conv (inplanes->P, no bias) + BN + ReLU
    p["conva_w"] = randn(rng, (9, inplanes, P))
    p["conva_bn"] = bn_affine(rng, P)
    # CFGCN.local: 3 x [depthwise 3x3 stride-2 conv (no bias) + BN] (BN scale folded into taps)
    for k in range(3):
        w = randn(rng, (9, P))
        s, b = bn_affine(rng, P)
        p[f"local{k}_w"] = (w * s[None, :]).reshape(9, 1, 1, P)
        p[f"local{k}_b"] = b.reshape(1, 1, P)
    # SpatialGCN(P): node_k / node_v / node_q 1x1 convs (bias, no BN) fused into one weight
    wk = randn(rng, (P, C2)); bk = randn(rng, (C2,))
    wv = randn(rng, (P, C2)); bv = randn(rng, (C2,))
    wq = randn(rng, (P, C2)); bq = randn(rng, (C2,))
    p["sg_wqkv"] = jnp.concatenate([wk, wv, wq], axis=1)       # order: k | v | q
    p["sg_bqkv"] = jnp.concatenate([bk, bv, bq])
    p["sg_wg_wT"] = randn(rng, (C2, C2)).T                     # conv_wg (k=1, no bias), transposed
    p["sg_wg_bn"] = bn_affine(rng, C2)
    p["sg_out_w"] = randn(rng, (C2, P))                        # out conv (bias folded into BN bias)
    sg_out_cb = randn(rng, (P,))
    s, b = bn_affine(rng, P)
    p["sg_out_scale"] = s
    p["sg_out_bias"] = b + sg_out_cb * s
    # CFGCN graph branch: phi (P->C2) + theta (P->C4), each with BN, fused into one matmul
    phi_w = randn(rng, (P, C2)); phi_s, phi_b = bn_affine(rng, C2)
    th_w = randn(rng, (P, C4)); th_s, th_b = bn_affine(rng, C4)
    p["pt_w"] = jnp.concatenate([phi_w, th_w], axis=1)
    p["pt_scale"] = jnp.concatenate([phi_s, th_s])
    p["pt_bias"] = jnp.concatenate([phi_b, th_b])
    p["adj_w"] = randn(rng, (C4, C4))                          # Conv1d weight [out, in]
    p["adj_scale"], p["adj_bias"] = bn_affine(rng, C4)
    p["wg_wT"] = randn(rng, (C2, C2)).T
    p["wg_scale"], p["wg_bias"] = bn_affine(rng, C2)
    p["conv3_w"] = randn(rng, (C2, P))
    p["bn3_scale"], p["bn3_bias"] = bn_affine(rng, P)
    p["final_w"] = randn(rng, (2 * P, P))
    p["final_bn"] = bn_affine(rng, P)
    # convb: 3x3 conv (P -> P//2, no bias) + BN + ReLU
    p["convb_w"] = randn(rng, (9, P, C2))
    p["convb_bn"] = bn_affine(rng, C2)
    return p


# ----------------------------------------------------------------------------
# Forward pass (CFGCNHead with y=None)
# ----------------------------------------------------------------------------
def cfgcn_head_forward(params, x):
    B, H, W, _ = x.shape
    P = params["P"]
    C2, C4 = P // 2, P // 4

    # ---- conva: fused 3x3 conv + BN + ReLU (bf16 activations out) ----
    o1_img = conv3x3_bn_act(x, params["conva_w"], *params["conva_bn"], relu=True)  # (B,H,W,P)
    o1 = o1_img.reshape(B * H * W, P)

    # ================= CFGCN(P), y=None =================
    # local path: 3 x [depthwise 3x3 s2 conv + BN]
    cur = o1_img
    for k in range(3):
        cur = dw_conv_s2(cur, params[f"local{k}_w"], params[f"local{k}_b"])
    hh, ww = cur.shape[1], cur.shape[2]
    hw = hh * ww

    # fused SpatialGCN on the downsampled features
    local_gcn = spatial_gcn(cur.reshape(B, hw, P), params["sg_wqkv"], params["sg_bqkv"],
                            params["sg_wg_wT"], *params["sg_wg_bn"],
                            params["sg_out_w"], params["sg_out_scale"], params["sg_out_bias"],
                            c2=C2)                                           # (B, hw, P)

    # separable bilinear upsample (align_corners=True) fused with x*local + x (row-striped)
    slf_img = upsample_muladd(local_gcn.reshape(B, hh, ww, P), o1_img)       # (B, H, W, P)
    slf = slf_img.reshape(B * H * W, P)

    # graph branch: fused phi/theta projections, then per-batch graph reasoning
    pt = mm_bn_act(o1, params["pt_w"], params["pt_scale"], params["pt_bias"])  # (B*HW, C2+C4)
    yr = graph_reasoning(pt.reshape(B, H * W, C2 + C4), C2, C4,
                         params["adj_w"], params["adj_scale"], params["adj_bias"],
                         params["wg_wT"], params["wg_scale"], params["wg_bias"])  # (B, HW, C2)

    # fused tail: conv3 + bn3 + residual + ReLU, concat-free final 1x1 conv + BN
    cfg = fused_tail(slf, o1, yr.reshape(B * H * W, C2),
                     params["conv3_w"], params["bn3_scale"], params["bn3_bias"],
                     params["final_w"][:P], params["final_w"][P:], *params["final_bn"])  # (B*HW, P)

    # ---- convb: fused 3x3 conv + BN + ReLU (final output in f32) ----
    out = conv3x3_bn_act(cfg.reshape(B, H, W, P), params["convb_w"],
                         *params["convb_bn"], relu=True, out_dtype=F32)      # (B, H, W, C2)
    return out


# ----------------------------------------------------------------------------
if __name__ == "__main__":
    inplanes, interplanes = 8, 16
    B, H, W = 2, 16, 16

    rng = Rng(0)                                   # all randomness derived from PRNGKey(0)
    params = init_params(inplanes, interplanes, rng)
    x = jax.random.normal(rng.next(), (B, H, W, inplanes), dtype=F32)

    out = cfgcn_head_forward(params, x)
    out = jax.block_until_ready(out)
    assert out.shape == (B, H, W, interplanes // 2), out.shape
    assert bool(jnp.all(jnp.isfinite(out)))
    print("KERNEL_OK")
</pallas_src>

<mosaic_0001>
module attributes {stable_mosaic.version = 11 : i64} {
  func.func @_conv3x3_kernel(%arg0: i32, %arg1: memref<1x10x18x8xbf16, #tpu.memory_space<vmem>>, %arg2: memref<9x8x16xbf16, #tpu.memory_space<vmem>>, %arg3: memref<1x16xf32, #tpu.memory_space<vmem>>, %arg4: memref<1x16xf32, #tpu.memory_space<vmem>>, %arg5: memref<1x8x16x16xbf16, #tpu.memory_space<vmem>>) attributes {dimension_semantics = [#tpu.dimension_semantics<parallel>], iteration_bounds = array<i64: 4>, scalar_prefetch = 0 : i64, scratch_operands = 0 : i64, tpu.core_type = #tpu.core_type<tc>, window_params = [{transform_indices = @transform_0, window_bounds = array<i64: 1, 10, 18, 8>}, {pipeline_mode = #tpu.pipeline_mode<synchronous>, transform_indices = @transform_1, window_bounds = array<i64: 9, 8, 16>}, {pipeline_mode = #tpu.pipeline_mode<synchronous>, transform_indices = @transform_2, window_bounds = array<i64: 1, 16>}, {pipeline_mode = #tpu.pipeline_mode<synchronous>, transform_indices = @transform_3, window_bounds = array<i64: 1, 16>}, {transform_indices = @transform_4, window_bounds = array<i64: 1, 8, 16, 16>}]} {
    %c0 = arith.constant 0 : index
    %c0_0 = arith.constant 0 : index
    %c0_1 = arith.constant 0 : index
    %c0_2 = arith.constant 0 : index
    %0 = vector.load %arg1[%c0, %c0_0, %c0_1, %c0_2] : memref<1x10x18x8xbf16, #tpu.memory_space<vmem>>, vector<1x10x18x8xbf16>
    %1 = vector.shape_cast %0 : vector<1x10x18x8xbf16> to vector<10x18x8xbf16>
    %cst = arith.constant 0.000000e+00 : f32
    %2 = vector.broadcast %cst : f32 to vector<128x16xf32>
    %3 = vector.extract_strided_slice %1 {offsets = [0, 0, 0], sizes = [8, 16, 8], strides = [1, 1, 1]} : vector<10x18x8xbf16> to vector<8x16x8xbf16>
    %4 = vector.shape_cast %3 : vector<8x16x8xbf16> to vector<128x8xbf16>
    %c0_3 = arith.constant 0 : index
    %c0_4 = arith.constant 0 : index
    %c0_5 = arith.constant 0 : index
    %5 = vector.load %arg2[%c0_3, %c0_4, %c0_5] : memref<9x8x16xbf16, #tpu.memory_space<vmem>>, vector<1x8x16xbf16>
    %6 = vector.shape_cast %5 : vector<1x8x16xbf16> to vector<8x16xbf16>
    %cst_6 = arith.constant dense<0.000000e+00> : vector<128x16xf32>
    %7 = tpu.matmul %4, %6, %cst_6 {dimension_numbers = #tpu.dot_dimension_numbers<[1], [0], [0], [1], [0, 0, 1, 1], [], []>} : vector<128x8xbf16>, vector<8x16xbf16>, vector<128x16xf32> -> vector<128x16xf32>
    %8 = arith.addf %2, %7 : vector<128x16xf32>
    %9 = vector.extract_strided_slice %1 {offsets = [0, 1, 0], sizes = [8, 16, 8], strides = [1, 1, 1]} : vector<10x18x8xbf16> to vector<8x16x8xbf16>
    %10 = vector.shape_cast %9 : vector<8x16x8xbf16> to vector<128x8xbf16>
    %c1 = arith.constant 1 : index
    %c0_7 = arith.constant 0 : index
    %c0_8 = arith.constant 0 : index
    %11 = vector.load %arg2[%c1, %c0_7, %c0_8] : memref<9x8x16xbf16, #tpu.memory_space<vmem>>, vector<1x8x16xbf16>
    %12 = vector.shape_cast %11 : vector<1x8x16xbf16> to vector<8x16xbf16>
    %cst_9 = arith.constant dense<0.000000e+00> : vector<128x16xf32>
    %13 = tpu.matmul %10, %12, %cst_9 {dimension_numbers = #tpu.dot_dimension_numbers<[1], [0], [0], [1], [0, 0, 1, 1], [], []>} : vector<128x8xbf16>, vector<8x16xbf16>, vector<128x16xf32> -> vector<128x16xf32>
    %14 = arith.addf %8, %13 : vector<128x16xf32>
    %15 = vector.extract_strided_slice %1 {offsets = [0, 2, 0], sizes = [8, 16, 8], strides = [1, 1, 1]} : vector<10x18x8xbf16> to vector<8x16x8xbf16>
    %16 = vector.shape_cast %15 : vector<8x16x8xbf16> to vector<128x8xbf16>
    %c2 = arith.constant 2 : index
    %c0_10 = arith.constant 0 : index
    %c0_11 = arith.constant 0 : index
    %17 = vector.load %arg2[%c2, %c0_10, %c0_11] : memref<9x8x16xbf16, #tpu.memory_space<vmem>>, vector<1x8x16xbf16>
    %18 = vector.shape_cast %17 : vector<1x8x16xbf16> to vector<8x16xbf16>
    %cst_12 = arith.constant dense<0.000000e+00> : vector<128x16xf32>
    %19 = tpu.matmul %16, %18, %cst_12 {dimension_numbers = #tpu.dot_dimension_numbers<[1], [0], [0], [1], [0, 0, 1, 1], [], []>} : vector<128x8xbf16>, vector<8x16xbf16>, vector<128x16xf32> -> vector<128x16xf32>
    %20 = arith.addf %14, %19 : vector<128x16xf32>
    %21 = vector.extract_strided_slice %1 {offsets = [1, 0, 0], sizes = [8, 16, 8], strides = [1, 1, 1]} : vector<10x18x8xbf16> to vector<8x16x8xbf16>
    %22 = vector.shape_cast %21 : vector<8x16x8xbf16> to vector<128x8xbf16>
    %c3 = arith.constant 3 : index
    %c0_13 = arith.constant 0 : index
    %c0_14 = arith.constant 0 : index
    %23 = vector.load %arg2[%c3, %c0_13, %c0_14] : memref<9x8x16xbf16, #tpu.memory_space<vmem>>, vector<1x8x16xbf16>
    %24 = vector.shape_cast %23 : vector<1x8x16xbf16> to vector<8x16xbf16>
    %cst_15 = arith.constant dense<0.000000e+00> : vector<128x16xf32>
    %25 = tpu.matmul %22, %24, %cst_15 {dimension_numbers = #tpu.dot_dimension_numbers<[1], [0], [0], [1], [0, 0, 1, 1], [], []>} : vector<128x8xbf16>, vector<8x16xbf16>, vector<128x16xf32> -> vector<128x16xf32>
    %26 = arith.addf %20, %25 : vector<128x16xf32>
    %27 = vector.extract_strided_slice %1 {offsets = [1, 1, 0], sizes = [8, 16, 8], strides = [1, 1, 1]} : vector<10x18x8xbf16> to vector<8x16x8xbf16>
    %28 = vector.shape_cast %27 : vector<8x16x8xbf16> to vector<128x8xbf16>
    %c4 = arith.constant 4 : index
    %c0_16 = arith.constant 0 : index
    %c0_17 = arith.constant 0 : index
    %29 = vector.load %arg2[%c4, %c0_16, %c0_17] : memref<9x8x16xbf16, #tpu.memory_space<vmem>>, vector<1x8x16xbf16>
    %30 = vector.shape_cast %29 : vector<1x8x16xbf16> to vector<8x16xbf16>
    %cst_18 = arith.constant dense<0.000000e+00> : vector<128x16xf32>
    %31 = tpu.matmul %28, %30, %cst_18 {dimension_numbers = #tpu.dot_dimension_numbers<[1], [0], [0], [1], [0, 0, 1, 1], [], []>} : vector<128x8xbf16>, vector<8x16xbf16>, vector<128x16xf32> -> vector<128x16xf32>
    %32 = arith.addf %26, %31 : vector<128x16xf32>
    %33 = vector.extract_strided_slice %1 {offsets = [1, 2, 0], sizes = [8, 16, 8], strides = [1, 1, 1]} : vector<10x18x8xbf16> to vector<8x16x8xbf16>
    %34 = vector.shape_cast %33 : vector<8x16x8xbf16> to vector<128x8xbf16>
    %c5 = arith.constant 5 : index
    %c0_19 = arith.constant 0 : index
    %c0_20 = arith.constant 0 : index
    %35 = vector.load %arg2[%c5, %c0_19, %c0_20] : memref<9x8x16xbf16, #tpu.memory_space<vmem>>, vector<1x8x16xbf16>
    %36 = vector.shape_cast %35 : vector<1x8x16xbf16> to vector<8x16xbf16>
    %cst_21 = arith.constant dense<0.000000e+00> : vector<128x16xf32>
    %37 = tpu.matmul %34, %36, %cst_21 {dimension_numbers = #tpu.dot_dimension_numbers<[1], [0], [0], [1], [0, 0, 1, 1], [], []>} : vector<128x8xbf16>, vector<8x16xbf16>, vector<128x16xf32> -> vector<128x16xf32>
    %38 = arith.addf %32, %37 : vector<128x16xf32>
    %39 = vector.extract_strided_slice %1 {offsets = [2, 0, 0], sizes = [8, 16, 8], strides = [1, 1, 1]} : vector<10x18x8xbf16> to vector<8x16x8xbf16>
    %40 = vector.shape_cast %39 : vector<8x16x8xbf16> to vector<128x8xbf16>
    %c6 = arith.constant 6 : index
    %c0_22 = arith.constant 0 : index
    %c0_23 = arith.constant 0 : index
    %41 = vector.load %arg2[%c6, %c0_22, %c0_23] : memref<9x8x16xbf16, #tpu.memory_space<vmem>>, vector<1x8x16xbf16>
    %42 = vector.shape_cast %41 : vector<1x8x16xbf16> to vector<8x16xbf16>
    %cst_24 = arith.constant dense<0.000000e+00> : vector<128x16xf32>
    %43 = tpu.matmul %40, %42, %cst_24 {dimension_numbers = #tpu.dot_dimension_numbers<[1], [0], [0], [1], [0, 0, 1, 1], [], []>} : vector<128x8xbf16>, vector<8x16xbf16>, vector<128x16xf32> -> vector<128x16xf32>
    %44 = arith.addf %38, %43 : vector<128x16xf32>
    %45 = vector.extract_strided_slice %1 {offsets = [2, 1, 0], sizes = [8, 16, 8], strides = [1, 1, 1]} : vector<10x18x8xbf16> to vector<8x16x8xbf16>
    %46 = vector.shape_cast %45 : vector<8x16x8xbf16> to vector<128x8xbf16>
    %c7 = arith.constant 7 : index
    %c0_25 = arith.constant 0 : index
    %c0_26 = arith.constant 0 : index
    %47 = vector.load %arg2[%c7, %c0_25, %c0_26] : memref<9x8x16xbf16, #tpu.memory_space<vmem>>, vector<1x8x16xbf16>
    %48 = vector.shape_cast %47 : vector<1x8x16xbf16> to vector<8x16xbf16>
    %cst_27 = arith.constant dense<0.000000e+00> : vector<128x16xf32>
    %49 = tpu.matmul %46, %48, %cst_27 {dimension_numbers = #tpu.dot_dimension_numbers<[1], [0], [0], [1], [0, 0, 1, 1], [], []>} : vector<128x8xbf16>, vector<8x16xbf16>, vector<128x16xf32> -> vector<128x16xf32>
    %50 = arith.addf %44, %49 : vector<128x16xf32>
    %51 = vector.extract_strided_slice %1 {offsets = [2, 2, 0], sizes = [8, 16, 8], strides = [1, 1, 1]} : vector<10x18x8xbf16> to vector<8x16x8xbf16>
    %52 = vector.shape_cast %51 : vector<8x16x8xbf16> to vector<128x8xbf16>
    %c8 = arith.constant 8 : index
    %c0_28 = arith.constant 0 : index
    %c0_29 = arith.constant 0 : index
    %53 = vector.load %arg2[%c8, %c0_28, %c0_29] : memref<9x8x16xbf16, #tpu.memory_space<vmem>>, vector<1x8x16xbf16>
    %54 = vector.shape_cast %53 : vector<1x8x16xbf16> to vector<8x16xbf16>
    %cst_30 = arith.constant dense<0.000000e+00> : vector<128x16xf32>
    %55 = tpu.matmul %52, %54, %cst_30 {dimension_numbers = #tpu.dot_dimension_numbers<[1], [0], [0], [1], [0, 0, 1, 1], [], []>} : vector<128x8xbf16>, vector<8x16xbf16>, vector<128x16xf32> -> vector<128x16xf32>
    %56 = arith.addf %50, %55 : vector<128x16xf32>
    %c0_31 = arith.constant 0 : index
    %c0_32 = arith.constant 0 : index
    %57 = vector.load %arg3[%c0_31, %c0_32] : memref<1x16xf32, #tpu.memory_space<vmem>>, vector<1x16xf32>
    %58 = vector.broadcast %57 : vector<1x16xf32> to vector<128x16xf32>
    %59 = arith.mulf %56, %58 : vector<128x16xf32>
    %c0_33 = arith.constant 0 : index
    %c0_34 = arith.constant 0 : index
    %60 = vector.load %arg4[%c0_33, %c0_34] : memref<1x16xf32, #tpu.memory_space<vmem>>, vector<1x16xf32>
    %61 = vector.broadcast %60 : vector<1x16xf32> to vector<128x16xf32>
    %62 = arith.addf %59, %61 : vector<128x16xf32>
    %cst_35 = arith.constant 0.000000e+00 : f32
    %63 = vector.broadcast %cst_35 : f32 to vector<128x16xf32>
    %64 = arith.maximumf %62, %63 : vector<128x16xf32>
    %65 = vector.shape_cast %64 : vector<128x16xf32> to vector<8x16x16xf32>
    %66 = arith.truncf %65 : vector<8x16x16xf32> to vector<8x16x16xbf16>
    %c0_36 = arith.constant 0 : index
    %c0_37 = arith.constant 0 : index
    %c0_38 = arith.constant 0 : index
    %c0_39 = arith.constant 0 : index
    %67 = vector.load %arg5[%c0_36, %c0_37, %c0_38, %c0_39] : memref<1x8x16x16xbf16, #tpu.memory_space<vmem>>, vector<1x8x16x16xbf16>
    %68 = vector.shape_cast %67 : vector<1x8x16x16xbf16> to vector<8x16x16xbf16>
    %69 = vector.shape_cast %66 : vector<8x16x16xbf16> to vector<1x8x16x16xbf16>
    tpu.vector_store %arg5[%c0_36, %c0_37, %c0_38, %c0_39], %69 {strides = array<i32>} : memref<1x8x16x16xbf16, #tpu.memory_space<vmem>>, vector<1x8x16x16xbf16>,
    return
  }
  func.func @transform_0(%arg0: i32) -> (i32, i32, i32, i32) {
    %c0_i32 = arith.constant 0 : i32
    %c0_i32_0 = arith.constant 0 : i32
    %c0_i32_1 = arith.constant 0 : i32
    %c0_i32_2 = arith.constant 0 : i32
    return %arg0, %c0_i32, %c0_i32_0, %c0_i32_1 : i32, i32, i32, i32
  }
  func.func @transform_1(%arg0: i32) -> (i32, i32, i32) {
    %c0_i32 = arith.constant 0 : i32
    %c0_i32_0 = arith.constant 0 : i32
    %c0_i32_1 = arith.constant 0 : i32
    %c0_i32_2 = arith.constant 0 : i32
    return %c0_i32, %c0_i32_0, %c0_i32_1 : i32, i32, i32
  }
  func.func @transform_2(%arg0: i32) -> (i32, i32) {
    %c0_i32 = arith.constant 0 : i32
    %c0_i32_0 = arith.constant 0 : i32
    %c0_i32_1 = arith.constant 0 : i32
    return %c0_i32, %c0_i32_0 : i32, i32
  }
  func.func @transform_3(%arg0: i32) -> (i32, i32) {
    %c0_i32 = arith.constant 0 : i32
    %c0_i32_0 = arith.constant 0 : i32
    %c0_i32_1 = arith.constant 0 : i32
    return %c0_i32, %c0_i32_0 : i32, i32
  }
  func.func @transform_4(%arg0: i32) -> (i32, i32, i32, i32) {
    %c0_i32 = arith.constant 0 : i32
    %c0_i32_0 = arith.constant 0 : i32
    %c0_i32_1 = arith.constant 0 : i32
    %c0_i32_2 = arith.constant 0 : i32
    return %arg0, %c0_i32, %c0_i32_0, %c0_i32_1 : i32, i32, i32, i32
  }
}

</mosaic_0001>

<llo_original>
// kernel: tpu_custom_call.1
$region0: #{tpu_custom_call.1}
  #allocation0 [shape = 'u32[]', space=smem, size = 0x4, offset = 0x4, fixed_abs, tag = 'smem constant byte address 0x4 - core index']
  #allocation1 [shape = 'u32[144,128]{1,0:T(1,128)}', space=vmem, size = 0x12000, scoped, tag = 'internal scratch']
  %s0 = inlined_call_operand.vmem [shape: bf16[4,10,18,8], index: 0, kind: input, shape index: {}]
  %s1 = inlined_call_operand.vmem [shape: bf16[9,8,16], index: 1, kind: input, shape index: {}]
  %s2 = inlined_call_operand.vmem [shape: f32[1,16], index: 2, kind: input, shape index: {}]
  %s3 = inlined_call_operand.vmem [shape: f32[1,16], index: 3, kind: input, shape index: {}]
  %s4 = inlined_call_operand.hbm [shape: bf16[4,8,16,16], index: 4, kind: output, shape index: {}]
  %s5 = sld [smem:[#allocation0]]
  $region49: #{tpu_custom_call.1} parent=0
    _
  %s7 = ssub.s32 1, %s5
  %s8 = scalar_select 0, %s7, %s5
  $region1: #{tpu_custom_call.1} parent=0
    #allocation2 [shape = 'u8[65536]{0}', space=vmem, size = 0x10000, scoped, tag = 'output window, operand 0']
    #allocation3 [shape = 's32[2]{0}', space=sflag, size = 0x8, scoped, tag = 'scoped memory for tpu_custom_call.1']
    %9 = vsyncpa [#allocation3], 0
    %s10 = scalar_lea.sflag [#allocation3], 1
    %11 = vsyncpa %s10, 0
    loop: start=0, step=1, limit=6
    $region2: #{tpu_custom_call.1} parent=1 // loop_pre_header
      _
    $region3: #{tpu_custom_call.1} parent=1 // loop_header
      %s13 = sphi 0, %s17
      %p14 = scmp.ge.s32.totalorder %s13, 6
      %s23 = sphi 0, %s25
      %s26 = sphi 0, %s23
      %s27 = sphi 0, %s26
      %s43 = sphi 0, %s27
      %s47 = sphi 0, %s47
      %s49 = sphi 0, %s47
      %s50 = sphi 0, %s49
      %s64 = sphi 0, %s50
      %s68 = sphi 0, %s68
      %s70 = sphi 0, %s68
      %s71 = sphi 0, %s70
      %s85 = sphi 0, %s71
      %s89 = sphi 0, %s89
      %s91 = sphi 0, %s89
      %s92 = sphi 0, %s91
      %s106 = sphi 0, %s92
      %s112 = sphi 0, %s114
      %s115 = sphi 0, %s112
      %s116 = sphi 0, %s115
      %s132 = sphi 0, %s116
    $region4: #{tpu_custom_call.1} parent=1 // loop_header_branch
      %16 = sbr.rel (%p14) target = $region8
    $region5: #{tpu_custom_call.1} parent=1 // loop_body
      %s18 = ssub.s32 %s13, 1
      %s19 = ssub.s32 %s13, 2
      %s20 = sadd.s32 %s13, 1
      %s21 = ssub.s32 %s13, %s20
      %p22 = scmp.eq.s32.totalorder %s21, 0
      %s24 = sadd.s32 %s23, 1
      %s25 = scalar_select %p22, %s23, %s24
      %p28 = pneg %p22
      %p29 = scmp.eq.s32.totalorder %s13, 3
      %p30 = por %p28, %p29
      %p31 = scmp.ne.s32.totalorder %s23, %s26
      %p32 = scmp.eq.s32.totalorder %s13, 0
      %p33 = por %p31, %p32
      %p34 = scmp.ne.s32.totalorder %s23, %s26
      %p35 = scmp.eq.s32.totalorder %s18, 3
      %p36 = por %p34, %p35
      %p37 = scmp.ne.s32.totalorder %s26, %s27
      %p38 = scmp.eq.s32.totalorder %s18, 0
      %p39 = por %p37, %p38
      %p40 = scmp.ne.s32.totalorder %s26, %s27
      %p41 = scmp.eq.s32.totalorder %s19, 3
      %p42 = por %p40, %p41
      %p44 = scmp.ne.s32.totalorder %s27, %s43
      %p45 = scmp.eq.s32.totalorder %s19, 0
      %p46 = por %p44, %p45
      %s48 = sadd.s32 %s47, 1
      %p51 = scmp.eq.s32.totalorder %s13, 3
      %p52 = scmp.ne.s32.totalorder %s47, %s49
      %p53 = scmp.eq.s32.totalorder %s13, 0
      %p54 = por %p52, %p53
      %p55 = scmp.ne.s32.totalorder %s47, %s49
      %p56 = scmp.eq.s32.totalorder %s18, 3
      %p57 = por %p55, %p56
      %p58 = scmp.ne.s32.totalorder %s49, %s50
      %p59 = scmp.eq.s32.totalorder %s18, 0
      %p60 = por %p58, %p59
      %p61 = scmp.ne.s32.totalorder %s49, %s50
      %p62 = scmp.eq.s32.totalorder %s19, 3
      %p63 = por %p61, %p62
      %p65 = scmp.ne.s32.totalorder %s50, %s64
      %p66 = scmp.eq.s32.totalorder %s19, 0
      %p67 = por %p65, %p66
      %s69 = sadd.s32 %s68, 1
      %p72 = scmp.eq.s32.totalorder %s13, 3
      %p73 = scmp.ne.s32.totalorder %s68, %s70
      %p74 = scmp.eq.s32.totalorder %s13, 0
      %p75 = por %p73, %p74
      %p76 = scmp.ne.s32.totalorder %s68, %s70
      %p77 = scmp.eq.s32.totalorder %s18, 3
      %p78 = por %p76, %p77
      %p79 = scmp.ne.s32.totalorder %s70, %s71
      %p80 = scmp.eq.s32.totalorder %s18, 0
      %p81 = por %p79, %p80
      %p82 = scmp.ne.s32.totalorder %s70, %s71
      %p83 = scmp.eq.s32.totalorder %s19, 3
      %p84 = por %p82, %p83
      %p86 = scmp.ne.s32.totalorder %s71, %s85
      %p87 = scmp.eq.s32.totalorder %s19, 0
      %p88 = por %p86, %p87
      %s90 = sadd.s32 %s89, 1
      %p93 = scmp.eq.s32.totalorder %s13, 3
      %p94 = scmp.ne.s32.totalorder %s89, %s91
      %p95 = scmp.eq.s32.totalorder %s13, 0
      %p96 = por %p94, %p95
      %p97 = scmp.ne.s32.totalorder %s89, %s91
      %p98 = scmp.eq.s32.totalorder %s18, 3
      %p99 = por %p97, %p98
      %p100 = scmp.ne.s32.totalorder %s91, %s92
      %p101 = scmp.eq.s32.totalorder %s18, 0
      %p102 = por %p100, %p101
      %p103 = scmp.ne.s32.totalorder %s91, %s92
      %p104 = scmp.eq.s32.totalorder %s19, 3
      %p105 = por %p103, %p104
      %p107 = scmp.ne.s32.totalorder %s92, %s106
      %p108 = scmp.eq.s32.totalorder %s19, 0
      %p109 = por %p107, %p108
      %s110 = ssub.s32 %s13, %s20
      %p111 = scmp.eq.s32.totalorder %s110, 0
      %s113 = sadd.s32 %s112, 1
      %s114 = scalar_select %p111, %s112, %s113
      %p117 = pneg %p111
      %p118 = scmp.eq.s32.totalorder %s13, 3
      %p119 = por %p117, %p118
      %p120 = scmp.ne.s32.totalorder %s112, %s115
      %p121 = scmp.eq.s32.totalorder %s13, 0
      %p122 = por %p120, %p121
      %p123 = scmp.ne.s32.totalorder %s112, %s115
      %p124 = scmp.eq.s32.totalorder %s18, 3
      %p125 = por %p123, %p124
      %p126 = scmp.ne.s32.totalorder %s115, %s116
      %p127 = scmp.eq.s32.totalorder %s18, 0
      %p128 = por %p126, %p127
      %p129 = scmp.ne.s32.totalorder %s115, %s116
      %p130 = scmp.eq.s32.totalorder %s19, 3
      %p131 = por %p129, %p130
      %p133 = scmp.ne.s32.totalorder %s116, %s132
      %p134 = scmp.eq.s32.totalorder %s19, 0
      %p135 = por %p133, %p134
      %p136 = scmp.le.s32.totalorder 1, %s13
      %p137 = scmp.lt.s32.totalorder %s13, 5
      %p138 = pnand %p136, %p137
      %p139 = pneg %p138
      // Predicated region
      $region9: #{tpu_custom_call.1} parent=5 // pred_check
        _
      $region10: #{tpu_custom_call.1} parent=5 // pred_check_branch
        %141 = sbr.rel (%p138) target = $region12
      $region11: #{tpu_custom_call.1} parent=5 // pred_region
        %s142 = ssub.s32 %s13, 1
        // Predicated region
        $region13: #{tpu_custom_call.1} parent=11 // pred_check
          %p143 = pneg %p60
        $region14: #{tpu_custom_call.1} parent=11 // pred_check_branch
          %145 = sbr.rel (%p143) target = $region16
        $region15: #{tpu_custom_call.1} parent=11 // pred_region
          _
        $region16: #{tpu_custom_call.1} parent=11 // pred_fallthru
          _
        // Predicated region
        $region17: #{tpu_custom_call.1} parent=11 // pred_check
          %p146 = pneg %p81
        $region18: #{tpu_custom_call.1} parent=11 // pred_check_branch
          %148 = sbr.rel (%p146) target = $region20
        $region19: #{tpu_custom_call.1} parent=11 // pred_region
          _
        $region20: #{tpu_custom_call.1} parent=11 // pred_fallthru
          _
        // Predicated region
        $region21: #{tpu_custom_call.1} parent=11 // pred_check
          %p149 = pneg %p102
        $region22: #{tpu_custom_call.1} parent=11 // pred_check_branch
          %151 = sbr.rel (%p149) target = $region24
        $region23: #{tpu_custom_call.1} parent=11 // pred_region
          _
        $region24: #{tpu_custom_call.1} parent=11 // pred_fallthru
          _
      $region12: #{tpu_custom_call.1} parent=5 // pred_fallthru
        _
      %p152 = scmp.lt.s32.totalorder %s13, 4
      // Predicated region
      $region25: #{tpu_custom_call.1} parent=5 // pred_check
        %p153 = pneg %p152
      $region26: #{tpu_custom_call.1} parent=5 // pred_check_branch
        %155 = sbr.rel (%p153) target = $region28
      $region27: #{tpu_custom_call.1} parent=5 // pred_region
        // Predicated region
        $region29: #{tpu_custom_call.1} parent=27 // pred_check
          %p156 = pneg %p33
        $region30: #{tpu_custom_call.1} parent=27 // pred_check_branch
          %158 = sbr.rel (%p156) target = $region32
        $region31: #{tpu_custom_call.1} parent=27 // pred_region
          %p159 = scmp.lt.s32.totalorder %s13, 3
          %s160 = scalar_select %p159, %s13, 3
          %s161 = smul.addr %s160, 30
          %s162 = smul.addr %s161, 4
          %s163 = scalar_lea.vmem %s0, %s162
        $region32: #{tpu_custom_call.1} parent=27 // pred_fallthru
          _
      $region28: #{tpu_custom_call.1} parent=5 // pred_fallthru
        _
      %p164 = scmp.le.s32.totalorder 1, %s13
      %p165 = scmp.lt.s32.totalorder %s13, 5
      %p166 = pnand %p164, %p165
      %p167 = pneg %p166
      // Predicated region
      $region33: #{tpu_custom_call.1} parent=5 // pred_check
        _
      $region34: #{tpu_custom_call.1} parent=5 // pred_check_branch
        %169 = sbr.rel (%p166) target = $region36
      $region35: #{tpu_custom_call.1} parent=5 // pred_region
        %s170 = ssub.s32 %s13, 1
        %p171 = scmp.lt.s32.totalorder %s18, 3
        %s172 = scalar_select %p171, %s18, 3
        %s173 = smul.addr %s172, 30
        %s174 = smul.addr %s173, 4
        %s175 = scalar_lea.vmem %s0, %s174
        %p176 = pneg %p39
        %p177 = pneg %p36
        %p178 = pneg %p60
        %p179 = pneg %p57
        %p180 = pneg %p81
        %p181 = pneg %p78
        %p182 = pneg %p102
        %p183 = pneg %p99
        %p184 = pneg %p128
        %p185 = pneg %p125
        %s186 = sand.u32 %s115, 1
        %s187 = scalar_lea.sflag [#allocation3], %s186
        %s188 = sand.u32 %s115, 1
        %s189 = smul.addr %s188, 64
        %s190 = scalar_lea.vmem [#allocation2], %s189
        %p191 = scmp.lt.s32.totalorder %s18, 3
        %s192 = scalar_select %p191, %s18, 3
        %s193 = smul.addr %s192, 30
        %s194 = smul.addr %s193, 4
        %s195 = scalar_lea.vmem %s0, %s194
        %v197 = vld [vmem:[%s195] sm:$0xf]
        %v198 = vld [vmem:[%s195 + $0x4] sm:$0xf]
        %v199 = vld [vmem:[%s195 + $0x8] sm:$0x1]
        %v200 = vld [vmem:[%s195 + $0xc] sm:$0xf]
        %v201 = vld [vmem:[%s195 + $0x10] sm:$0xf]
        %v202 = vld [vmem:[%s195 + $0x14] sm:$0x1]
        %v203 = vld [vmem:[%s195 + $0x18] sm:$0xf]
        %v204 = vld [vmem:[%s195 + $0x1c] sm:$0xf]
        %v205 = vld [vmem:[%s195 + $0x20] sm:$0x1]
        %v206 = vld [vmem:[%s195 + $0x24] sm:$0xf]
        %v207 = vld [vmem:[%s195 + $0x28] sm:$0xf]
        %v208 = vld [vmem:[%s195 + $0x2c] sm:$0x1]
        %v209 = vld [vmem:[%s195 + $0x30] sm:$0xf]
        %v210 = vld [vmem:[%s195 + $0x34] sm:$0xf]
        %v211 = vld [vmem:[%s195 + $0x38] sm:$0x1]
        %v212 = vld [vmem:[%s195 + $0x3c] sm:$0xf]
        %v213 = vld [vmem:[%s195 + $0x40] sm:$0xf]
        %v214 = vld [vmem:[%s195 + $0x44] sm:$0x1]
        %v215 = vld [vmem:[%s195 + $0x48] sm:$0xf]
        %v216 = vld [vmem:[%s195 + $0x4c] sm:$0xf]
        %v217 = vld [vmem:[%s195 + $0x50] sm:$0x1]
        %v218 = vld [vmem:[%s195 + $0x54] sm:$0xf]
        %v219 = vld [vmem:[%s195 + $0x58] sm:$0xf]
        %v220 = vld [vmem:[%s195 + $0x5c] sm:$0x1]
        %v221 = vld [vmem:[%s195 + $0x60] sm:$0xf]
        %v222 = vld [vmem:[%s195 + $0x64] sm:$0xf]
        %v223 = vld [vmem:[%s195 + $0x68] sm:$0x1]
        %v224 = vld [vmem:[%s195 + $0x6c] sm:$0xf]
        %v225 = vld [vmem:[%s195 + $0x70] sm:$0xf]
        %v226 = vld [vmem:[%s195 + $0x74] sm:$0x1]
        %v227 = vld [vmem:[%s1] sm:$0xf]
        %vm228 = vsmask.f32 3328
        %vm229 = vsmask.f32 7440
        %vm230 = vmor %vm228, %vm229
        %v232 = vshrl.u32 %v197, 16
        %v234 = vrot.slane %v232, 4
        %v235 = vshll.u32 %v197, 16
        %v237 = vrot.slane %v235, 5
        %v238 = vor.u32 %v234, %v237
        %v239 = vrot.slane %v238, 4
        %v241 = vshll.u32 %v198, 16
        %v243 = vrot.slane %v241, 5
        %v244 = vsel %vm230, %v239, %v243
        %v245 = vshrl.u32 %v198, 16
        %v247 = vrot.slane %v245, 4
        %v248 = vor.u32 %v247, %v243
        %v249 = vrot.slane %v248, 4
        %v251 = vshll.u32 %v199, 16
        %v253 = vrot.slane %v251, 5
        %v254 = vsel %vm230, %v249, %v253
        %v256 = vshrl.u32 %v200, 16
        %v258 = vrot.slane %v256, 4
        %v259 = vshll.u32 %v200, 16
        %v261 = vrot.slane %v259, 5
        %v262 = vor.u32 %v258, %v261
        %v263 = vrot.slane %v262, 4
        %v265 = vshll.u32 %v201, 16
        %v267 = vrot.slane %v265, 5
        %v268 = vsel %vm230, %v263, %v267
        %v269 = vshrl.u32 %v201, 16
        %v271 = vrot.slane %v269, 4
        %v272 = vor.u32 %v271, %v267
        %v273 = vrot.slane %v272, 4
        %v275 = vshll.u32 %v202, 16
        %v277 = vrot.slane %v275, 5
        %v278 = vsel %vm230, %v273, %v277
        %v280 = vshrl.u32 %v203, 16
        %v282 = vrot.slane %v280, 4
        %v283 = vshll.u32 %v203, 16
        %v285 = vrot.slane %v283, 5
        %v286 = vor.u32 %v282, %v285
        %v287 = vrot.slane %v286, 4
        %v289 = vshll.u32 %v204, 16
        %v291 = vrot.slane %v289, 5
        %v292 = vsel %vm230, %v287, %v291
        %v293 = vshrl.u32 %v204, 16
        %v295 = vrot.slane %v293, 4
        %v296 = vor.u32 %v295, %v291
        %v297 = vrot.slane %v296, 4
        %v299 = vshll.u32 %v205, 16
        %v301 = vrot.slane %v299, 5
        %v302 = vsel %vm230, %v297, %v301
        %v304 = vshrl.u32 %v206, 16
        %v306 = vrot.slane %v304, 4
        %v307 = vshll.u32 %v206, 16
        %v309 = vrot.slane %v307, 5
        %v310 = vor.u32 %v306, %v309
        %v311 = vrot.slane %v310, 4
        %v313 = vshll.u32 %v207, 16
        %v315 = vrot.slane %v313, 5
        %v316 = vsel %vm230, %v311, %v315
        %v317 = vshrl.u32 %v207, 16
        %v319 = vrot.slane %v317, 4
        %v320 = vor.u32 %v319, %v315
        %v321 = vrot.slane %v320, 4
        %v323 = vshll.u32 %v208, 16
        %v325 = vrot.slane %v323, 5
        %v326 = vsel %vm230, %v321, %v325
        %v328 = vshrl.u32 %v209, 16
        %v330 = vrot.slane %v328, 4
        %v331 = vshll.u32 %v209, 16
        %v333 = vrot.slane %v331, 5
        %v334 = vor.u32 %v330, %v333
        %v335 = vrot.slane %v334, 4
        %v337 = vshll.u32 %v210, 16
        %v339 = vrot.slane %v337, 5
        %v340 = vsel %vm230, %v335, %v339
        %v341 = vshrl.u32 %v210, 16
        %v343 = vrot.slane %v341, 4
        %v344 = vor.u32 %v343, %v339
        %v345 = vrot.slane %v344, 4
        %v347 = vshll.u32 %v211, 16
        %v349 = vrot.slane %v347, 5
        %v350 = vsel %vm230, %v345, %v349
        %v352 = vshrl.u32 %v212, 16
        %v354 = vrot.slane %v352, 4
        %v355 = vshll.u32 %v212, 16
        %v357 = vrot.slane %v355, 5
        %v358 = vor.u32 %v354, %v357
        %v359 = vrot.slane %v358, 4
        %v361 = vshll.u32 %v213, 16
        %v363 = vrot.slane %v361, 5
        %v364 = vsel %vm230, %v359, %v363
        %v365 = vshrl.u32 %v213, 16
        %v367 = vrot.slane %v365, 4
        %v368 = vor.u32 %v367, %v363
        %v369 = vrot.slane %v368, 4
        %v371 = vshll.u32 %v214, 16
        %v373 = vrot.slane %v371, 5
        %v374 = vsel %vm230, %v369, %v373
        %v376 = vshrl.u32 %v215, 16
        %v378 = vrot.slane %v376, 4
        %v379 = vshll.u32 %v215, 16
        %v381 = vrot.slane %v379, 5
        %v382 = vor.u32 %v378, %v381
        %v383 = vrot.slane %v382, 4
        %v385 = vshll.u32 %v216, 16
        %v387 = vrot.slane %v385, 5
        %v388 = vsel %vm230, %v383, %v387
        %v389 = vshrl.u32 %v216, 16
        %v391 = vrot.slane %v389, 4
        %v392 = vor.u32 %v391, %v387
        %v393 = vrot.slane %v392, 4
        %v395 = vshll.u32 %v217, 16
        %v397 = vrot.slane %v395, 5
        %v398 = vsel %vm230, %v393, %v397
        %v400 = vshrl.u32 %v218, 16
        %v402 = vrot.slane %v400, 4
        %v403 = vshll.u32 %v218, 16
        %v405 = vrot.slane %v403, 5
        %v406 = vor.u32 %v402, %v405
        %v407 = vrot.slane %v406, 4
        %v409 = vshll.u32 %v219, 16
        %v411 = vrot.slane %v409, 5
        %v412 = vsel %vm230, %v407, %v411
        %v413 = vshrl.u32 %v219, 16
        %v415 = vrot.slane %v413, 4
        %v416 = vor.u32 %v415, %v411
        %v417 = vrot.slane %v416, 4
        %v419 = vshll.u32 %v220, 16
        %v421 = vrot.slane %v419, 5
        %v422 = vsel %vm230, %v417, %v421
        %s423 = scalar_lea.vmem %s1, 4
        %v424 = vld [vmem:[%s423] sm:$0xf]
        %v425 = vunpack.c.l.b16 %v244
        %v426 = vunpack.c.l.b16 %v254
        %v427 = vunpack.c.l.b16 %v268
        %v428 = vunpack.c.l.b16 %v278
        %v429 = vunpack.c.l.b16 %v292
        %v430 = vunpack.c.l.b16 %v302
        %v431 = vunpack.c.l.b16 %v316
        %v432 = vunpack.c.l.b16 %v326
        %v433 = vunpack.c.l.b16 %v340
        %v434 = vunpack.c.l.b16 %v350
        %v435 = vunpack.c.l.b16 %v364
        %v436 = vunpack.c.l.b16 %v374
        %v437 = vunpack.c.l.b16 %v388
        %v438 = vunpack.c.l.b16 %v398
        %v439 = vunpack.c.l.b16 %v412
        %v440 = vunpack.c.l.b16 %v422
        %v441 = vpack.c.b16 %v426, %v425
        %v442 = vpack.c.b16 %v428, %v427
        %v443 = vpack.c.b16 %v430, %v429
        %v444 = vpack.c.b16 %v432, %v431
        %v445 = vpack.c.b16 %v434, %v433
        %v446 = vpack.c.b16 %v436, %v435
        %v447 = vpack.c.b16 %v438, %v437
        %v448 = vpack.c.b16 %v440, %v439
        %vm449 = vcmask 64512
        %v451 = vsel %vm449, %v441, 0
        %v454 = vsel %vm449, %v442, 0
        %v457 = vsel %vm449, %v443, 0
        %v460 = vsel %vm449, %v444, 0
        %v463 = vsel %vm449, %v445, 0
        %v466 = vsel %vm449, %v446, 0
        %v469 = vsel %vm449, %v447, 0
        %v472 = vsel %vm449, %v448, 0
        %vm474 = vcmask 1043456
        %v476 = vsel %vm474, %v424, 0
        %478 = vmatprep.subr.bf16.mxu0 0
        %479 = vmatpush1.bf16.msra.mxu0 0
        %480 = vmatprep.subr.bf16.mxu0 0
        %481 = vmatpush1.bf16.msra.mxu0 0
        %482 = vmatprep.subr.bf16.mxu0 0
        %483 = vmatpush1.bf16.msra.mxu0 0
        %484 = vmatprep.subr.bf16.mxu0 0
        %485 = vmatpush1.bf16.msra.mxu0 0
        %486 = vmatprep.subr.bf16.mxu0 0
        %487 = vmatpush1.bf16.msra.mxu0 0
        %488 = vmatprep.subr.bf16.mxu0 0
        %489 = vmatpush1.bf16.msra.mxu0 0
        %490 = vmatprep.subr.bf16.mxu0 0
        %491 = vmatpush1.bf16.msra.mxu0 0
        %492 = vmatprep.subr.bf16.mxu0 0
        %493 = vmatpush1.bf16.msra.mxu0 %v476
        %494 = vmatprep.subr.bf16.mxu0 0
        %495 = vmatpush2.bf16.msra.mxu0 0
        %496 = vmatprep.subr.bf16.mxu0 0
        %497 = vmatpush2.bf16.msra.mxu0 0
        %498 = vmatprep.subr.bf16.mxu0 0
        %499 = vmatpush2.bf16.msra.mxu0 0
        %500 = vmatprep.subr.bf16.mxu0 0
        %501 = vmatpush2.bf16.msra.mxu0 0
        %502 = vmatprep.subr.bf16.mxu0 0
        %503 = vmatpush2.bf16.msra.mxu0 0
        %504 = vmatprep.subr.bf16.mxu0 0
        %505 = vmatpush2.bf16.msra.mxu0 0
        %506 = vmatprep.subr.bf16.mxu0 0
        %507 = vmatpush2.bf16.msra.mxu0 0
        %508 = vmatprep.subr.bf16.mxu0 0
        %509 = vmatpush2.bf16.msra.mxu0 0
        %510 = vmatprep.mubr.bf16.mxu0 0
        %511 = vmatmul.mubr.bf16.gmra.mxu0 %v451
        %v512 = vpop.f32.mrf.mxu0
        %v513 = vadd.f32 0.0, %v512
        %v514 = vpop.f32.mrf.mxu0
        %v515 = vpop.f32.mrf.mxu0
        %v516 = vadd.f32 0.0, %v515
        %v517 = vpop.f32.mrf.mxu0
        %518 = vmatprep.mubr.bf16.mxu0 0
        %519 = vmatmul.mubr.bf16.gmra.mxu0 %v454
        %v520 = vpop.f32.mrf.mxu0
        %v521 = vadd.f32 0.0, %v520
        %v522 = vpop.f32.mrf.mxu0
        %v523 = vpop.f32.mrf.mxu0
        %v524 = vadd.f32 0.0, %v523
        %v525 = vpop.f32.mrf.mxu0
        %526 = vmatprep.mubr.bf16.mxu0 0
        %527 = vmatmul.mubr.bf16.gmra.mxu0 %v457
        %v528 = vpop.f32.mrf.mxu0
        %v529 = vadd.f32 0.0, %v528
        %v530 = vpop.f32.mrf.mxu0
        %v531 = vpop.f32.mrf.mxu0
        %v532 = vadd.f32 0.0, %v531
        %v533 = vpop.f32.mrf.mxu0
        %534 = vmatprep.mubr.bf16.mxu0 0
        %535 = vmatmul.mubr.bf16.gmra.mxu0 %v460
        %v536 = vpop.f32.mrf.mxu0
        %v537 = vadd.f32 0.0, %v536
        %v538 = vpop.f32.mrf.mxu0
        %v539 = vpop.f32.mrf.mxu0
        %v540 = vadd.f32 0.0, %v539
        %v541 = vpop.f32.mrf.mxu0
        %542 = vmatprep.mubr.bf16.mxu0 0
        %543 = vmatmul.mubr.bf16.gmra.mxu0 %v463
        %v544 = vpop.f32.mrf.mxu0
        %v545 = vadd.f32 0.0, %v544
        %v546 = vpop.f32.mrf.mxu0
        %v547 = vpop.f32.mrf.mxu0
        %v548 = vadd.f32 0.0, %v547
        %v549 = vpop.f32.mrf.mxu0
        %550 = vmatprep.mubr.bf16.mxu0 0
        %551 = vmatmul.mubr.bf16.gmra.mxu0 %v466
        %v552 = vpop.f32.mrf.mxu0
        %v553 = vadd.f32 0.0, %v552
        %v554 = vpop.f32.mrf.mxu0
        %v555 = vpop.f32.mrf.mxu0
        %v556 = vadd.f32 0.0, %v555
        %v557 = vpop.f32.mrf.mxu0
        %558 = vmatprep.mubr.bf16.mxu0 0
        %559 = vmatmul.mubr.bf16.gmra.mxu0 %v469
        %v560 = vpop.f32.mrf.mxu0
        %v561 = vadd.f32 0.0, %v560
        %v562 = vpop.f32.mrf.mxu0
        %v563 = vpop.f32.mrf.mxu0
        %v564 = vadd.f32 0.0, %v563
        %v565 = vpop.f32.mrf.mxu0
        %566 = vmatprep.mubr.bf16.mxu0 0
        %567 = vmatmul.mubr.bf16.gmra.mxu0 %v472
        %v568 = vpop.f32.mrf.mxu0
        %v569 = vadd.f32 0.0, %v568
        %v570 = vpop.f32.mrf.mxu0
        %v571 = vpop.f32.mrf.mxu0
        %v572 = vadd.f32 0.0, %v571
        %v573 = vpop.f32.mrf.mxu0
        %574 = vdwg.mxu0
        %v591 = vunpack.c.l.b16 %v197
        %v592 = vunpack.c.l.b16 %v198
        %v593 = vunpack.c.l.b16 %v200
        %v594 = vunpack.c.l.b16 %v201
        %v595 = vunpack.c.l.b16 %v203
        %v596 = vunpack.c.l.b16 %v204
        %v597 = vunpack.c.l.b16 %v206
        %v598 = vunpack.c.l.b16 %v207
        %v599 = vunpack.c.l.b16 %v209
        %v600 = vunpack.c.l.b16 %v210
        %v601 = vunpack.c.l.b16 %v212
        %v602 = vunpack.c.l.b16 %v213
        %v603 = vunpack.c.l.b16 %v215
        %v604 = vunpack.c.l.b16 %v216
        %v605 = vunpack.c.l.b16 %v218
        %v606 = vunpack.c.l.b16 %v219
        %v607 = vpack.c.b16 %v592, %v591
        %v608 = vpack.c.b16 %v594, %v593
        %v609 = vpack.c.b16 %v596, %v595
        %v610 = vpack.c.b16 %v598, %v597
        %v611 = vpack.c.b16 %v600, %v599
        %v612 = vpack.c.b16 %v602, %v601
        %v613 = vpack.c.b16 %v604, %v603
        %v614 = vpack.c.b16 %v606, %v605
        %v616 = vsel %vm449, %v607, 0
        %v619 = vsel %vm449, %v608, 0
        %v622 = vsel %vm449, %v609, 0
        %v625 = vsel %vm449, %v610, 0
        %v628 = vsel %vm449, %v611, 0
        %v631 = vsel %vm449, %v612, 0
        %v634 = vsel %vm449, %v613, 0
        %v637 = vsel %vm449, %v614, 0
        %v640 = vsel %vm474, %v227, 0
        %642 = vmatprep.subr.bf16.mxu0 0
        %643 = vmatpush1.bf16.msra.mxu0 0
        %644 = vmatprep.subr.bf16.mxu0 0
        %645 = vmatpush1.bf16.msra.mxu0 0
        %646 = vmatprep.subr.bf16.mxu0 0
        %647 = vmatpush1.bf16.msra.mxu0 0
        %648 = vmatprep.subr.bf16.mxu0 0
        %649 = vmatpush1.bf16.msra.mxu0 0
        %650 = vmatprep.subr.bf16.mxu0 0
        %651 = vmatpush1.bf16.msra.mxu0 0
        %652 = vmatprep.subr.bf16.mxu0 0
        %653 = vmatpush1.bf16.msra.mxu0 0
        %654 = vmatprep.subr.bf16.mxu0 0
        %655 = vmatpush1.bf16.msra.mxu0 0
        %656 = vmatprep.subr.bf16.mxu0 0
        %657 = vmatpush1.bf16.msra.mxu0 %v640
        %658 = vmatprep.subr.bf16.mxu0 0
        %659 = vmatpush2.bf16.msra.mxu0 0
        %660 = vmatprep.subr.bf16.mxu0 0
        %661 = vmatpush2.bf16.msra.mxu0 0
        %662 = vmatprep.subr.bf16.mxu0 0
        %663 = vmatpush2.bf16.msra.mxu0 0
        %664 = vmatprep.subr.bf16.mxu0 0
        %665 = vmatpush2.bf16.msra.mxu0 0
        %666 = vmatprep.subr.bf16.mxu0 0
        %667 = vmatpush2.bf16.msra.mxu0 0
        %668 = vmatprep.subr.bf16.mxu0 0
        %669 = vmatpush2.bf16.msra.mxu0 0
        %670 = vmatprep.subr.bf16.mxu0 0
        %671 = vmatpush2.bf16.msra.mxu0 0
        %672 = vmatprep.subr.bf16.mxu0 0
        %673 = vmatpush2.bf16.msra.mxu0 0
        %674 = vmatprep.mubr.bf16.mxu0 0
        %675 = vmatmul.mubr.bf16.gmra.mxu0 %v616
        %v676 = vpop.f32.mrf.mxu0
        %v677 = vadd.f32 %v513, %v676
        %v678 = vpop.f32.mrf.mxu0
        %v679 = vpop.f32.mrf.mxu0
        %v680 = vadd.f32 %v516, %v679
        %v681 = vpop.f32.mrf.mxu0
        %682 = vmatprep.mubr.bf16.mxu0 0
        %683 = vmatmul.mubr.bf16.gmra.mxu0 %v619
        %v684 = vpop.f32.mrf.mxu0
        %v685 = vadd.f32 %v521, %v684
        %v686 = vpop.f32.mrf.mxu0
        %v687 = vpop.f32.mrf.mxu0
        %v688 = vadd.f32 %v524, %v687
        %v689 = vpop.f32.mrf.mxu0
        %690 = vmatprep.mubr.bf16.mxu0 0
        %691 = vmatmul.mubr.bf16.gmra.mxu0 %v622
        %v692 = vpop.f32.mrf.mxu0
        %v693 = vadd.f32 %v529, %v692
        %v694 = vpop.f32.mrf.mxu0
        %v695 = vpop.f32.mrf.mxu0
        %v696 = vadd.f32 %v532, %v695
        %v697 = vpop.f32.mrf.mxu0
        %698 = vmatprep.mubr.bf16.mxu0 0
        %699 = vmatmul.mubr.bf16.gmra.mxu0 %v625
        %v700 = vpop.f32.mrf.mxu0
        %v701 = vadd.f32 %v537, %v700
        %v702 = vpop.f32.mrf.mxu0
        %v703 = vpop.f32.mrf.mxu0
        %v704 = vadd.f32 %v540, %v703
        %v705 = vpop.f32.mrf.mxu0
        %706 = vmatprep.mubr.bf16.mxu0 0
        %707 = vmatmul.mubr.bf16.gmra.mxu0 %v628
        %v708 = vpop.f32.mrf.mxu0
        %v709 = vadd.f32 %v545, %v708
        %v710 = vpop.f32.mrf.mxu0
        %v711 = vpop.f32.mrf.mxu0
        %v712 = vadd.f32 %v548, %v711
        %v713 = vpop.f32.mrf.mxu0
        %714 = vmatprep.mubr.bf16.mxu0 0
        %715 = vmatmul.mubr.bf16.gmra.mxu0 %v631
        %v716 = vpop.f32.mrf.mxu0
        %v717 = vadd.f32 %v553, %v716
        %v718 = vpop.f32.mrf.mxu0
        %v719 = vpop.f32.mrf.mxu0
        %v720 = vadd.f32 %v556, %v719
        %v721 = vpop.f32.mrf.mxu0
        %722 = vmatprep.mubr.bf16.mxu0 0
        %723 = vmatmul.mubr.bf16.gmra.mxu0 %v634
        %v724 = vpop.f32.mrf.mxu0
        %v725 = vadd.f32 %v561, %v724
        %v726 = vpop.f32.mrf.mxu0
        %v727 = vpop.f32.mrf.mxu0
        %v728 = vadd.f32 %v564, %v727
        %v729 = vpop.f32.mrf.mxu0
        %730 = vmatprep.mubr.bf16.mxu0 0
        %731 = vmatmul.mubr.bf16.gmra.mxu0 %v637
        %v732 = vpop.f32.mrf.mxu0
        %v733 = vadd.f32 %v569, %v732
        %v734 = vpop.f32.mrf.mxu0
        %v735 = vpop.f32.mrf.mxu0
        %v736 = vadd.f32 %v572, %v735
        %v737 = vpop.f32.mrf.mxu0
        %738 = vdwg.mxu0
        %vm747 = vcmask 1042432
        %vm748 = vcmask 1046532
        %vm749 = vmor %vm747, %vm748
        %v750 = vrot.slane %v197, 5
        %v751 = vrot.slane %v750, 4
        %v752 = vrot.slane %v198, 5
        %v753 = vsel %vm749, %v751, %v752
        %v754 = vrot.slane %v752, 4
        %v755 = vrot.slane %v199, 5
        %v756 = vsel %vm749, %v754, %v755
        %v757 = vrot.slane %v200, 5
        %v758 = vrot.slane %v757, 4
        %v759 = vrot.slane %v201, 5
        %v760 = vsel %vm749, %v758, %v759
        %v761 = vrot.slane %v759, 4
        %v762 = vrot.slane %v202, 5
        %v763 = vsel %vm749, %v761, %v762
        %v764 = vrot.slane %v203, 5
        %v765 = vrot.slane %v764, 4
        %v766 = vrot.slane %v204, 5
        %v767 = vsel %vm749, %v765, %v766
        %v768 = vrot.slane %v766, 4
        %v769 = vrot.slane %v205, 5
        %v770 = vsel %vm749, %v768, %v769
        %v771 = vrot.slane %v206, 5
        %v772 = vrot.slane %v771, 4
        %v773 = vrot.slane %v207, 5
        %v774 = vsel %vm749, %v772, %v773
        %v775 = vrot.slane %v773, 4
        %v776 = vrot.slane %v208, 5
        %v777 = vsel %vm749, %v775, %v776
        %v778 = vrot.slane %v209, 5
        %v779 = vrot.slane %v778, 4
        %v780 = vrot.slane %v210, 5
        %v781 = vsel %vm749, %v779, %v780
        %v782 = vrot.slane %v780, 4
        %v783 = vrot.slane %v211, 5
        %v784 = vsel %vm749, %v782, %v783
        %v785 = vrot.slane %v212, 5
        %v786 = vrot.slane %v785, 4
        %v787 = vrot.slane %v213, 5
        %v788 = vsel %vm749, %v786, %v787
        %v789 = vrot.slane %v787, 4
        %v790 = vrot.slane %v214, 5
        %v791 = vsel %vm749, %v789, %v790
        %v792 = vrot.slane %v215, 5
        %v793 = vrot.slane %v792, 4
        %v794 = vrot.slane %v216, 5
        %v795 = vsel %vm749, %v793, %v794
        %v796 = vrot.slane %v794, 4
        %v797 = vrot.slane %v217, 5
        %v798 = vsel %vm749, %v796, %v797
        %v799 = vrot.slane %v218, 5
        %v800 = vrot.slane %v799, 4
        %v801 = vrot.slane %v219, 5
        %v802 = vsel %vm749, %v800, %v801
        %v803 = vrot.slane %v801, 4
        %v804 = vrot.slane %v220, 5
        %v805 = vsel %vm749, %v803, %v804
        %s806 = scalar_lea.vmem %s1, 8
        %v807 = vld [vmem:[%s806] sm:$0xf]
        %v808 = vunpack.c.l.b16 %v753
        %v809 = vunpack.c.l.b16 %v756
        %v810 = vunpack.c.l.b16 %v760
        %v811 = vunpack.c.l.b16 %v763
        %v812 = vunpack.c.l.b16 %v767
        %v813 = vunpack.c.l.b16 %v770
        %v814 = vunpack.c.l.b16 %v774
        %v815 = vunpack.c.l.b16 %v777
        %v816 = vunpack.c.l.b16 %v781
        %v817 = vunpack.c.l.b16 %v784
        %v818 = vunpack.c.l.b16 %v788
        %v819 = vunpack.c.l.b16 %v791
        %v820 = vunpack.c.l.b16 %v795
        %v821 = vunpack.c.l.b16 %v798
        %v822 = vunpack.c.l.b16 %v802
        %v823 = vunpack.c.l.b16 %v805
        %v824 = vpack.c.b16 %v809, %v808
        %v825 = vpack.c.b16 %v811, %v810
        %v826 = vpack.c.b16 %v813, %v812
        %v827 = vpack.c.b16 %v815, %v814
        %v828 = vpack.c.b16 %v817, %v816
        %v829 = vpack.c.b16 %v819, %v818
        %v830 = vpack.c.b16 %v821, %v820
        %v831 = vpack.c.b16 %v823, %v822
        %v833 = vsel %vm449, %v824, 0
        %v836 = vsel %vm449, %v825, 0
        %v839 = vsel %vm449, %v826, 0
        %v842 = vsel %vm449, %v827, 0
        %v845 = vsel %vm449, %v828, 0
        %v848 = vsel %vm449, %v829, 0
        %v851 = vsel %vm449, %v830, 0
        %v854 = vsel %vm449, %v831, 0
        %v857 = vsel %vm474, %v807, 0
        %859 = vmatprep.subr.bf16.mxu0 0
        %860 = vmatpush1.bf16.msra.mxu0 0
        %861 = vmatprep.subr.bf16.mxu0 0
        %862 = vmatpush1.bf16.msra.mxu0 0
        %863 = vmatprep.subr.bf16.mxu0 0
        %864 = vmatpush1.bf16.msra.mxu0 0
        %865 = vmatprep.subr.bf16.mxu0 0
        %866 = vmatpush1.bf16.msra.mxu0 0
        %867 = vmatprep.subr.bf16.mxu0 0
        %868 = vmatpush1.bf16.msra.mxu0 0
        %869 = vmatprep.subr.bf16.mxu0 0
        %870 = vmatpush1.bf16.msra.mxu0 0
        %871 = vmatprep.subr.bf16.mxu0 0
        %872 = vmatpush1.bf16.msra.mxu0 0
        %873 = vmatprep.subr.bf16.mxu0 0
        %874 = vmatpush1.bf16.msra.mxu0 %v857
        %875 = vmatprep.subr.bf16.mxu0 0
        %876 = vmatpush2.bf16.msra.mxu0 0
        %877 = vmatprep.subr.bf16.mxu0 0
        %878 = vmatpush2.bf16.msra.mxu0 0
        %879 = vmatprep.subr.bf16.mxu0 0
        %880 = vmatpush2.bf16.msra.mxu0 0
        %881 = vmatprep.subr.bf16.mxu0 0
        %882 = vmatpush2.bf16.msra.mxu0 0
        %883 = vmatprep.subr.bf16.mxu0 0
        %884 = vmatpush2.bf16.msra.mxu0 0
        %885 = vmatprep.subr.bf16.mxu0 0
        %886 = vmatpush2.bf16.msra.mxu0 0
        %887 = vmatprep.subr.bf16.mxu0 0
        %888 = vmatpush2.bf16.msra.mxu0 0
        %889 = vmatprep.subr.bf16.mxu0 0
        %890 = vmatpush2.bf16.msra.mxu0 0
        %891 = vmatprep.mubr.bf16.mxu0 0
        %892 = vmatmul.mubr.bf16.gmra.mxu0 %v833
        %v893 = vpop.f32.mrf.mxu0
        %v894 = vadd.f32 0.0, %v893
        %v895 = vpop.f32.mrf.mxu0
        %v896 = vpop.f32.mrf.mxu0
        %v897 = vadd.f32 0.0, %v896
        %v898 = vpop.f32.mrf.mxu0
        %899 = vmatprep.mubr.bf16.mxu0 0
        %900 = vmatmul.mubr.bf16.gmra.mxu0 %v836
        %v901 = vpop.f32.mrf.mxu0
        %v902 = vadd.f32 0.0, %v901
        %v903 = vpop.f32.mrf.mxu0
        %v904 = vpop.f32.mrf.mxu0
        %v905 = vadd.f32 0.0, %v904
        %v906 = vpop.f32.mrf.mxu0
        %907 = vmatprep.mubr.bf16.mxu0 0
        %908 = vmatmul.mubr.bf16.gmra.mxu0 %v839
        %v909 = vpop.f32.mrf.mxu0
        %v910 = vadd.f32 0.0, %v909
        %v911 = vpop.f32.mrf.mxu0
        %v912 = vpop.f32.mrf.mxu0
        %v913 = vadd.f32 0.0, %v912
        %v914 = vpop.f32.mrf.mxu0
        %915 = vmatprep.mubr.bf16.mxu0 0
        %916 = vmatmul.mubr.bf16.gmra.mxu0 %v842
        %v917 = vpop.f32.mrf.mxu0
        %v918 = vadd.f32 0.0, %v917
        %v919 = vpop.f32.mrf.mxu0
        %v920 = vpop.f32.mrf.mxu0
        %v921 = vadd.f32 0.0, %v920
        %v922 = vpop.f32.mrf.mxu0
        %923 = vmatprep.mubr.bf16.mxu0 0
        %924 = vmatmul.mubr.bf16.gmra.mxu0 %v845
        %v925 = vpop.f32.mrf.mxu0
        %v926 = vadd.f32 0.0, %v925
        %v927 = vpop.f32.mrf.mxu0
        %v928 = vpop.f32.mrf.mxu0
        %v929 = vadd.f32 0.0, %v928
        %v930 = vpop.f32.mrf.mxu0
        %931 = vmatprep.mubr.bf16.mxu0 0
        %932 = vmatmul.mubr.bf16.gmra.mxu0 %v848
        %v933 = vpop.f32.mrf.mxu0
        %v934 = vadd.f32 0.0, %v933
        %v935 = vpop.f32.mrf.mxu0
        %v936 = vpop.f32.mrf.mxu0
        %v937 = vadd.f32 0.0, %v936
        %v938 = vpop.f32.mrf.mxu0
        %939 = vmatprep.mubr.bf16.mxu0 0
        %940 = vmatmul.mubr.bf16.gmra.mxu0 %v851
        %v941 = vpop.f32.mrf.mxu0
        %v942 = vadd.f32 0.0, %v941
        %v943 = vpop.f32.mrf.mxu0
        %v944 = vpop.f32.mrf.mxu0
        %v945 = vadd.f32 0.0, %v944
        %v946 = vpop.f32.mrf.mxu0
        %947 = vmatprep.mubr.bf16.mxu0 0
        %948 = vmatmul.mubr.bf16.gmra.mxu0 %v854
        %v949 = vpop.f32.mrf.mxu0
        %v950 = vadd.f32 0.0, %v949
        %v951 = vpop.f32.mrf.mxu0
        %v952 = vpop.f32.mrf.mxu0
        %v953 = vadd.f32 0.0, %v952
        %v954 = vpop.f32.mrf.mxu0
        %955 = vdwg.mxu0
        %v956 = vadd.f32 %v677, %v894
        %v957 = vadd.f32 %v680, %v897
        %v958 = vadd.f32 %v685, %v902
        %v959 = vadd.f32 %v688, %v905
        %v960 = vadd.f32 %v693, %v910
        %v961 = vadd.f32 %v696, %v913
        %v962 = vadd.f32 %v701, %v918
        %v963 = vadd.f32 %v704, %v921
        %v964 = vadd.f32 %v709, %v926
        %v965 = vadd.f32 %v712, %v929
        %v966 = vadd.f32 %v717, %v934
        %v967 = vadd.f32 %v720, %v937
        %v968 = vadd.f32 %v725, %v942
        %v969 = vadd.f32 %v728, %v945
        %v970 = vadd.f32 %v733, %v950
        %v971 = vadd.f32 %v736, %v953
        %s972 = scalar_lea.vmem %s1, 12
        %v973 = vld [vmem:[%s972] sm:$0xf]
        %v976 = vunpack.c.l.b16 %v221
        %v977 = vunpack.c.l.b16 %v222
        %v978 = vpack.c.b16 %v977, %v976
        %v980 = vsel %vm449, %v978, 0
        %v983 = vsel %vm474, %v973, 0
        %985 = vmatprep.subr.bf16.mxu0 0
        %986 = vmatpush1.bf16.msra.mxu0 0
        %987 = vmatprep.subr.bf16.mxu0 0
        %988 = vmatpush1.bf16.msra.mxu0 0
        %989 = vmatprep.subr.bf16.mxu0 0
        %990 = vmatpush1.bf16.msra.mxu0 0
        %991 = vmatprep.subr.bf16.mxu0 0
        %992 = vmatpush1.bf16.msra.mxu0 0
        %993 = vmatprep.subr.bf16.mxu0 0
        %994 = vmatpush1.bf16.msra.mxu0 0
        %995 = vmatprep.subr.bf16.mxu0 0
        %996 = vmatpush1.bf16.msra.mxu0 0
        %997 = vmatprep.subr.bf16.mxu0 0
        %998 = vmatpush1.bf16.msra.mxu0 0
        %999 = vmatprep.subr.bf16.mxu0 0
        %1000 = vmatpush1.bf16.msra.mxu0 %v983
        %1001 = vmatprep.subr.bf16.mxu0 0
        %1002 = vmatpush2.bf16.msra.mxu0 0
        %1003 = vmatprep.subr.bf16.mxu0 0
        %1004 = vmatpush2.bf16.msra.mxu0 0
        %1005 = vmatprep.subr.bf16.mxu0 0
        %1006 = vmatpush2.bf16.msra.mxu0 0
        %1007 = vmatprep.subr.bf16.mxu0 0
        %1008 = vmatpush2.bf16.msra.mxu0 0
        %1009 = vmatprep.subr.bf16.mxu0 0
        %1010 = vmatpush2.bf16.msra.mxu0 0
        %1011 = vmatprep.subr.bf16.mxu0 0
        %1012 = vmatpush2.bf16.msra.mxu0 0
        %1013 = vmatprep.subr.bf16.mxu0 0
        %1014 = vmatpush2.bf16.msra.mxu0 0
        %1015 = vmatprep.subr.bf16.mxu0 0
        %1016 = vmatpush2.bf16.msra.mxu0 0
        %1017 = vmatprep.mubr.bf16.mxu0 0
        %1018 = vmatmul.mubr.bf16.gmra.mxu0 %v619
        %v1019 = vpop.f32.mrf.mxu0
        %v1020 = vadd.f32 0.0, %v1019
        %v1021 = vpop.f32.mrf.mxu0
        %v1022 = vpop.f32.mrf.mxu0
        %v1023 = vadd.f32 0.0, %v1022
        %v1024 = vpop.f32.mrf.mxu0
        %1025 = vmatprep.mubr.bf16.mxu0 0
        %1026 = vmatmul.mubr.bf16.gmra.mxu0 %v622
        %v1027 = vpop.f32.mrf.mxu0
        %v1028 = vadd.f32 0.0, %v1027
        %v1029 = vpop.f32.mrf.mxu0
        %v1030 = vpop.f32.mrf.mxu0
        %v1031 = vadd.f32 0.0, %v1030
        %v1032 = vpop.f32.mrf.mxu0
        %1033 = vmatprep.mubr.bf16.mxu0 0
        %1034 = vmatmul.mubr.bf16.gmra.mxu0 %v625
        %v1035 = vpop.f32.mrf.mxu0
        %v1036 = vadd.f32 0.0, %v1035
        %v1037 = vpop.f32.mrf.mxu0
        %v1038 = vpop.f32.mrf.mxu0
        %v1039 = vadd.f32 0.0, %v1038
        %v1040 = vpop.f32.mrf.mxu0
        %1041 = vmatprep.mubr.bf16.mxu0 0
        %1042 = vmatmul.mubr.bf16.gmra.mxu0 %v628
        %v1043 = vpop.f32.mrf.mxu0
        %v1044 = vadd.f32 0.0, %v1043
        %v1045 = vpop.f32.mrf.mxu0
        %v1046 = vpop.f32.mrf.mxu0
        %v1047 = vadd.f32 0.0, %v1046
        %v1048 = vpop.f32.mrf.mxu0
        %1049 = vmatprep.mubr.bf16.mxu0 0
        %1050 = vmatmul.mubr.bf16.gmra.mxu0 %v631
        %v1051 = vpop.f32.mrf.mxu0
        %v1052 = vadd.f32 0.0, %v1051
        %v1053 = vpop.f32.mrf.mxu0
        %v1054 = vpop.f32.mrf.mxu0
        %v1055 = vadd.f32 0.0, %v1054
        %v1056 = vpop.f32.mrf.mxu0
        %1057 = vmatprep.mubr.bf16.mxu0 0
        %1058 = vmatmul.mubr.bf16.gmra.mxu0 %v634
        %v1059 = vpop.f32.mrf.mxu0
        %v1060 = vadd.f32 0.0, %v1059
        %v1061 = vpop.f32.mrf.mxu0
        %v1062 = vpop.f32.mrf.mxu0
        %v1063 = vadd.f32 0.0, %v1062
        %v1064 = vpop.f32.mrf.mxu0
        %1065 = vmatprep.mubr.bf16.mxu0 0
        %1066 = vmatmul.mubr.bf16.gmra.mxu0 %v637
        %v1067 = vpop.f32.mrf.mxu0
        %v1068 = vadd.f32 0.0, %v1067
        %v1069 = vpop.f32.mrf.mxu0
        %v1070 = vpop.f32.mrf.mxu0
        %v1071 = vadd.f32 0.0, %v1070
        %v1072 = vpop.f32.mrf.mxu0
        %1073 = vmatprep.mubr.bf16.mxu0 0
        %1074 = vmatmul.mubr.bf16.gmra.mxu0 %v980
        %v1075 = vpop.f32.mrf.mxu0
        %v1076 = vadd.f32 0.0, %v1075
        %v1077 = vpop.f32.mrf.mxu0
        %v1078 = vpop.f32.mrf.mxu0
        %v1079 = vadd.f32 0.0, %v1078
        %v1080 = vpop.f32.mrf.mxu0
        %1081 = vdwg.mxu0
        %v1082 = vadd.f32 %v956, %v1020
        %v1083 = vadd.f32 %v957, %v1023
        %v1084 = vadd.f32 %v958, %v1028
        %v1085 = vadd.f32 %v959, %v1031
        %v1086 = vadd.f32 %v960, %v1036
        %v1087 = vadd.f32 %v961, %v1039
        %v1088 = vadd.f32 %v962, %v1044
        %v1089 = vadd.f32 %v963, %v1047
        %v1090 = vadd.f32 %v964, %v1052
        %v1091 = vadd.f32 %v965, %v1055
        %v1092 = vadd.f32 %v966, %v1060
        %v1093 = vadd.f32 %v967, %v1063
        %v1094 = vadd.f32 %v968, %v1068
        %v1095 = vadd.f32 %v969, %v1071
        %v1096 = vadd.f32 %v970, %v1076
        %v1097 = vadd.f32 %v971, %v1079
        %v1099 = vshrl.u32 %v221, 16
        %v1101 = vrot.slane %v1099, 4
        %v1102 = vshll.u32 %v221, 16
        %v1104 = vrot.slane %v1102, 5
        %v1105 = vor.u32 %v1101, %v1104
        %v1106 = vrot.slane %v1105, 4
        %v1108 = vshll.u32 %v222, 16
        %v1110 = vrot.slane %v1108, 5
        %v1111 = vsel %vm230, %v1106, %v1110
        %v1112 = vshrl.u32 %v222, 16
        %v1114 = vrot.slane %v1112, 4
        %v1115 = vor.u32 %v1114, %v1110
        %v1116 = vrot.slane %v1115, 4
        %v1118 = vshll.u32 %v223, 16
        %v1120 = vrot.slane %v1118, 5
        %v1121 = vsel %vm230, %v1116, %v1120
        %s1122 = scalar_lea.vmem %s1, 16
        %v1123 = vld [vmem:[%s1122] sm:$0xf]
        %v1124 = vunpack.c.l.b16 %v1111
        %v1125 = vunpack.c.l.b16 %v1121
        %v1126 = vpack.c.b16 %v1125, %v1124
        %v1128 = vsel %vm449, %v1126, 0
        %v1131 = vsel %vm474, %v1123, 0
        %1133 = vmatprep.subr.bf16.mxu0 0
        %1134 = vmatpush1.bf16.msra.mxu0 0
        %1135 = vmatprep.subr.bf16.mxu0 0
        %1136 = vmatpush1.bf16.msra.mxu0 0
        %1137 = vmatprep.subr.bf16.mxu0 0
        %1138 = vmatpush1.bf16.msra.mxu0 0
        %1139 = vmatprep.subr.bf16.mxu0 0
        %1140 = vmatpush1.bf16.msra.mxu0 0
        %1141 = vmatprep.subr.bf16.mxu0 0
        %1142 = vmatpush1.bf16.msra.mxu0 0
        %1143 = vmatprep.subr.bf16.mxu0 0
        %1144 = vmatpush1.bf16.msra.mxu0 0
        %1145 = vmatprep.subr.bf16.mxu0 0
        %1146 = vmatpush1.bf16.msra.mxu0 0
        %1147 = vmatprep.subr.bf16.mxu0 0
        %1148 = vmatpush1.bf16.msra.mxu0 %v1131
        %1149 = vmatprep.subr.bf16.mxu0 0
        %1150 = vmatpush2.bf16.msra.mxu0 0
        %1151 = vmatprep.subr.bf16.mxu0 0
        %1152 = vmatpush2.bf16.msra.mxu0 0
        %1153 = vmatprep.subr.bf16.mxu0 0
        %1154 = vmatpush2.bf16.msra.mxu0 0
        %1155 = vmatprep.subr.bf16.mxu0 0
        %1156 = vmatpush2.bf16.msra.mxu0 0
        %1157 = vmatprep.subr.bf16.mxu0 0
        %1158 = vmatpush2.bf16.msra.mxu0 0
        %1159 = vmatprep.subr.bf16.mxu0 0
        %1160 = vmatpush2.bf16.msra.mxu0 0
        %1161 = vmatprep.subr.bf16.mxu0 0
        %1162 = vmatpush2.bf16.msra.mxu0 0
        %1163 = vmatprep.subr.bf16.mxu0 0
        %1164 = vmatpush2.bf16.msra.mxu0 0
        %1165 = vmatprep.mubr.bf16.mxu0 0
        %1166 = vmatmul.mubr.bf16.gmra.mxu0 %v454
        %v1167 = vpop.f32.mrf.mxu0
        %v1168 = vadd.f32 0.0, %v1167
        %v1169 = vpop.f32.mrf.mxu0
        %v1170 = vpop.f32.mrf.mxu0
        %v1171 = vadd.f32 0.0, %v1170
        %v1172 = vpop.f32.mrf.mxu0
        %1173 = vmatprep.mubr.bf16.mxu0 0
        %1174 = vmatmul.mubr.bf16.gmra.mxu0 %v457
        %v1175 = vpop.f32.mrf.mxu0
        %v1176 = vadd.f32 0.0, %v1175
        %v1177 = vpop.f32.mrf.mxu0
        %v1178 = vpop.f32.mrf.mxu0
        %v1179 = vadd.f32 0.0, %v1178
        %v1180 = vpop.f32.mrf.mxu0
        %1181 = vmatprep.mubr.bf16.mxu0 0
        %1182 = vmatmul.mubr.bf16.gmra.mxu0 %v460
        %v1183 = vpop.f32.mrf.mxu0
        %v1184 = vadd.f32 0.0, %v1183
        %v1185 = vpop.f32.mrf.mxu0
        %v1186 = vpop.f32.mrf.mxu0
        %v1187 = vadd.f32 0.0, %v1186
        %v1188 = vpop.f32.mrf.mxu0
        %1189 = vmatprep.mubr.bf16.mxu0 0
        %1190 = vmatmul.mubr.bf16.gmra.mxu0 %v463
        %v1191 = vpop.f32.mrf.mxu0
        %v1192 = vadd.f32 0.0, %v1191
        %v1193 = vpop.f32.mrf.mxu0
        %v1194 = vpop.f32.mrf.mxu0
        %v1195 = vadd.f32 0.0, %v1194
        %v1196 = vpop.f32.mrf.mxu0
        %1197 = vmatprep.mubr.bf16.mxu0 0
        %1198 = vmatmul.mubr.bf16.gmra.mxu0 %v466
        %v1199 = vpop.f32.mrf.mxu0
        %v1200 = vadd.f32 0.0, %v1199
        %v1201 = vpop.f32.mrf.mxu0
        %v1202 = vpop.f32.mrf.mxu0
        %v1203 = vadd.f32 0.0, %v1202
        %v1204 = vpop.f32.mrf.mxu0
        %1205 = vmatprep.mubr.bf16.mxu0 0
        %1206 = vmatmul.mubr.bf16.gmra.mxu0 %v469
        %v1207 = vpop.f32.mrf.mxu0
        %v1208 = vadd.f32 0.0, %v1207
        %v1209 = vpop.f32.mrf.mxu0
        %v1210 = vpop.f32.mrf.mxu0
        %v1211 = vadd.f32 0.0, %v1210
        %v1212 = vpop.f32.mrf.mxu0
        %1213 = vmatprep.mubr.bf16.mxu0 0
        %1214 = vmatmul.mubr.bf16.gmra.mxu0 %v472
        %v1215 = vpop.f32.mrf.mxu0
        %v1216 = vadd.f32 0.0, %v1215
        %v1217 = vpop.f32.mrf.mxu0
        %v1218 = vpop.f32.mrf.mxu0
        %v1219 = vadd.f32 0.0, %v1218
        %v1220 = vpop.f32.mrf.mxu0
        %1221 = vmatprep.mubr.bf16.mxu0 0
        %1222 = vmatmul.mubr.bf16.gmra.mxu0 %v1128
        %v1223 = vpop.f32.mrf.mxu0
        %v1224 = vadd.f32 0.0, %v1223
        %v1225 = vpop.f32.mrf.mxu0
        %v1226 = vpop.f32.mrf.mxu0
        %v1227 = vadd.f32 0.0, %v1226
        %v1228 = vpop.f32.mrf.mxu0
        %1229 = vdwg.mxu0
        %v1230 = vadd.f32 %v1082, %v1168
        %v1231 = vadd.f32 %v1083, %v1171
        %v1232 = vadd.f32 %v1084, %v1176
        %v1233 = vadd.f32 %v1085, %v1179
        %v1234 = vadd.f32 %v1086, %v1184
        %v1235 = vadd.f32 %v1087, %v1187
        %v1236 = vadd.f32 %v1088, %v1192
        %v1237 = vadd.f32 %v1089, %v1195
        %v1238 = vadd.f32 %v1090, %v1200
        %v1239 = vadd.f32 %v1091, %v1203
        %v1240 = vadd.f32 %v1092, %v1208
        %v1241 = vadd.f32 %v1093, %v1211
        %v1242 = vadd.f32 %v1094, %v1216
        %v1243 = vadd.f32 %v1095, %v1219
        %v1244 = vadd.f32 %v1096, %v1224
        %v1245 = vadd.f32 %v1097, %v1227
        %v1247 = vrot.slane %v221, 5
        %v1248 = vrot.slane %v1247, 4
        %v1249 = vrot.slane %v222, 5
        %v1250 = vsel %vm749, %v1248, %v1249
        %v1251 = vrot.slane %v1249, 4
        %v1252 = vrot.slane %v223, 5
        %v1253 = vsel %vm749, %v1251, %v1252
        %s1254 = scalar_lea.vmem %s1, 20
        %v1255 = vld [vmem:[%s1254] sm:$0xf]
        %v1256 = vunpack.c.l.b16 %v1250
        %v1257 = vunpack.c.l.b16 %v1253
        %v1258 = vpack.c.b16 %v1257, %v1256
        %v1260 = vsel %vm449, %v1258, 0
        %v1263 = vsel %vm474, %v1255, 0
        %1265 = vmatprep.subr.bf16.mxu0 0
        %1266 = vmatpush1.bf16.msra.mxu0 0
        %1267 = vmatprep.subr.bf16.mxu0 0
        %1268 = vmatpush1.bf16.msra.mxu0 0
        %1269 = vmatprep.subr.bf16.mxu0 0
        %1270 = vmatpush1.bf16.msra.mxu0 0
        %1271 = vmatprep.subr.bf16.mxu0 0
        %1272 = vmatpush1.bf16.msra.mxu0 0
        %1273 = vmatprep.subr.bf16.mxu0 0
        %1274 = vmatpush1.bf16.msra.mxu0 0
        %1275 = vmatprep.subr.bf16.mxu0 0
        %1276 = vmatpush1.bf16.msra.mxu0 0
        %1277 = vmatprep.subr.bf16.mxu0 0
        %1278 = vmatpush1.bf16.msra.mxu0 0
        %1279 = vmatprep.subr.bf16.mxu0 0
        %1280 = vmatpush1.bf16.msra.mxu0 %v1263
        %1281 = vmatprep.subr.bf16.mxu0 0
        %1282 = vmatpush2.bf16.msra.mxu0 0
        %1283 = vmatprep.subr.bf16.mxu0 0
        %1284 = vmatpush2.bf16.msra.mxu0 0
        %1285 = vmatprep.subr.bf16.mxu0 0
        %1286 = vmatpush2.bf16.msra.mxu0 0
        %1287 = vmatprep.subr.bf16.mxu0 0
        %1288 = vmatpush2.bf16.msra.mxu0 0
        %1289 = vmatprep.subr.bf16.mxu0 0
        %1290 = vmatpush2.bf16.msra.mxu0 0
        %1291 = vmatprep.subr.bf16.mxu0 0
        %1292 = vmatpush2.bf16.msra.mxu0 0
        %1293 = vmatprep.subr.bf16.mxu0 0
        %1294 = vmatpush2.bf16.msra.mxu0 0
        %1295 = vmatprep.subr.bf16.mxu0 0
        %1296 = vmatpush2.bf16.msra.mxu0 0
        %1297 = vmatprep.mubr.bf16.mxu0 0
        %1298 = vmatmul.mubr.bf16.gmra.mxu0 %v836
        %v1299 = vpop.f32.mrf.mxu0
        %v1300 = vadd.f32 0.0, %v1299
        %v1301 = vpop.f32.mrf.mxu0
        %v1302 = vpop.f32.mrf.mxu0
        %v1303 = vadd.f32 0.0, %v1302
        %v1304 = vpop.f32.mrf.mxu0
        %1305 = vmatprep.mubr.bf16.mxu0 0
        %1306 = vmatmul.mubr.bf16.gmra.mxu0 %v839
        %v1307 = vpop.f32.mrf.mxu0
        %v1308 = vadd.f32 0.0, %v1307
        %v1309 = vpop.f32.mrf.mxu0
        %v1310 = vpop.f32.mrf.mxu0
        %v1311 = vadd.f32 0.0, %v1310
        %v1312 = vpop.f32.mrf.mxu0
        %1313 = vmatprep.mubr.bf16.mxu0 0
        %1314 = vmatmul.mubr.bf16.gmra.mxu0 %v842
        %v1315 = vpop.f32.mrf.mxu0
        %v1316 = vadd.f32 0.0, %v1315
        %v1317 = vpop.f32.mrf.mxu0
        %v1318 = vpop.f32.mrf.mxu0
        %v1319 = vadd.f32 0.0, %v1318
        %v1320 = vpop.f32.mrf.mxu0
        %1321 = vmatprep.mubr.bf16.mxu0 0
        %1322 = vmatmul.mubr.bf16.gmra.mxu0 %v845
        %v1323 = vpop.f32.mrf.mxu0
        %v1324 = vadd.f32 0.0, %v1323
        %v1325 = vpop.f32.mrf.mxu0
        %v1326 = vpop.f32.mrf.mxu0
        %v1327 = vadd.f32 0.0, %v1326
        %v1328 = vpop.f32.mrf.mxu0
        %1329 = vmatprep.mubr.bf16.mxu0 0
        %1330 = vmatmul.mubr.bf16.gmra.mxu0 %v848
        %v1331 = vpop.f32.mrf.mxu0
        %v1332 = vadd.f32 0.0, %v1331
        %v1333 = vpop.f32.mrf.mxu0
        %v1334 = vpop.f32.mrf.mxu0
        %v1335 = vadd.f32 0.0, %v1334
        %v1336 = vpop.f32.mrf.mxu0
        %1337 = vmatprep.mubr.bf16.mxu0 0
        %1338 = vmatmul.mubr.bf16.gmra.mxu0 %v851
        %v1339 = vpop.f32.mrf.mxu0
        %v1340 = vadd.f32 0.0, %v1339
        %v1341 = vpop.f32.mrf.mxu0
        %v1342 = vpop.f32.mrf.mxu0
        %v1343 = vadd.f32 0.0, %v1342
        %v1344 = vpop.f32.mrf.mxu0
        %1345 = vmatprep.mubr.bf16.mxu0 0
        %1346 = vmatmul.mubr.bf16.gmra.mxu0 %v854
        %v1347 = vpop.f32.mrf.mxu0
        %v1348 = vadd.f32 0.0, %v1347
        %v1349 = vpop.f32.mrf.mxu0
        %v1350 = vpop.f32.mrf.mxu0
        %v1351 = vadd.f32 0.0, %v1350
        %v1352 = vpop.f32.mrf.mxu0
        %1353 = vmatprep.mubr.bf16.mxu0 0
        %1354 = vmatmul.mubr.bf16.gmra.mxu0 %v1260
        %v1355 = vpop.f32.mrf.mxu0
        %v1356 = vadd.f32 0.0, %v1355
        %v1357 = vpop.f32.mrf.mxu0
        %v1358 = vpop.f32.mrf.mxu0
        %v1359 = vadd.f32 0.0, %v1358
        %v1360 = vpop.f32.mrf.mxu0
        %1361 = vdwg.mxu0
        %v1362 = vadd.f32 %v1230, %v1300
        %v1363 = vadd.f32 %v1231, %v1303
        %v1364 = vadd.f32 %v1232, %v1308
        %v1365 = vadd.f32 %v1233, %v1311
        %v1366 = vadd.f32 %v1234, %v1316
        %v1367 = vadd.f32 %v1235, %v1319
        %v1368 = vadd.f32 %v1236, %v1324
        %v1369 = vadd.f32 %v1237, %v1327
        %v1370 = vadd.f32 %v1238, %v1332
        %v1371 = vadd.f32 %v1239, %v1335
        %v1372 = vadd.f32 %v1240, %v1340
        %v1373 = vadd.f32 %v1241, %v1343
        %v1374 = vadd.f32 %v1242, %v1348
        %v1375 = vadd.f32 %v1243, %v1351
        %v1376 = vadd.f32 %v1244, %v1356
        %v1377 = vadd.f32 %v1245, %v1359
        %s1378 = scalar_lea.vmem %s1, 24
        %v1379 = vld [vmem:[%s1378] sm:$0xf]
        %v1382 = vunpack.c.l.b16 %v224
        %v1383 = vunpack.c.l.b16 %v225
        %v1384 = vpack.c.b16 %v1383, %v1382
        %v1386 = vsel %vm449, %v1384, 0
        %v1389 = vsel %vm474, %v1379, 0
        %1391 = vmatprep.subr.bf16.mxu0 0
        %1392 = vmatpush1.bf16.msra.mxu0 0
        %1393 = vmatprep.subr.bf16.mxu0 0
        %1394 = vmatpush1.bf16.msra.mxu0 0
        %1395 = vmatprep.subr.bf16.mxu0 0
        %1396 = vmatpush1.bf16.msra.mxu0 0
        %1397 = vmatprep.subr.bf16.mxu0 0
        %1398 = vmatpush1.bf16.msra.mxu0 0
        %1399 = vmatprep.subr.bf16.mxu0 0
        %1400 = vmatpush1.bf16.msra.mxu0 0
        %1401 = vmatprep.subr.bf16.mxu0 0
        %1402 = vmatpush1.bf16.msra.mxu0 0
        %1403 = vmatprep.subr.bf16.mxu0 0
        %1404 = vmatpush1.bf16.msra.mxu0 0
        %1405 = vmatprep.subr.bf16.mxu0 0
        %1406 = vmatpush1.bf16.msra.mxu0 %v1389
        %1407 = vmatprep.subr.bf16.mxu0 0
        %1408 = vmatpush2.bf16.msra.mxu0 0
        %1409 = vmatprep.subr.bf16.mxu0 0
        %1410 = vmatpush2.bf16.msra.mxu0 0
        %1411 = vmatprep.subr.bf16.mxu0 0
        %1412 = vmatpush2.bf16.msra.mxu0 0
        %1413 = vmatprep.subr.bf16.mxu0 0
        %1414 = vmatpush2.bf16.msra.mxu0 0
        %1415 = vmatprep.subr.bf16.mxu0 0
        %1416 = vmatpush2.bf16.msra.mxu0 0
        %1417 = vmatprep.subr.bf16.mxu0 0
        %1418 = vmatpush2.bf16.msra.mxu0 0
        %1419 = vmatprep.subr.bf16.mxu0 0
        %1420 = vmatpush2.bf16.msra.mxu0 0
        %1421 = vmatprep.subr.bf16.mxu0 0
        %1422 = vmatpush2.bf16.msra.mxu0 0
        %1423 = vmatprep.mubr.bf16.mxu0 0
        %1424 = vmatmul.mubr.bf16.gmra.mxu0 %v622
        %v1425 = vpop.f32.mrf.mxu0
        %v1426 = vadd.f32 0.0, %v1425
        %v1427 = vpop.f32.mrf.mxu0
        %v1428 = vpop.f32.mrf.mxu0
        %v1429 = vadd.f32 0.0, %v1428
        %v1430 = vpop.f32.mrf.mxu0
        %1431 = vmatprep.mubr.bf16.mxu0 0
        %1432 = vmatmul.mubr.bf16.gmra.mxu0 %v625
        %v1433 = vpop.f32.mrf.mxu0
        %v1434 = vadd.f32 0.0, %v1433
        %v1435 = vpop.f32.mrf.mxu0
        %v1436 = vpop.f32.mrf.mxu0
        %v1437 = vadd.f32 0.0, %v1436
        %v1438 = vpop.f32.mrf.mxu0
        %1439 = vmatprep.mubr.bf16.mxu0 0
        %1440 = vmatmul.mubr.bf16.gmra.mxu0 %v628
        %v1441 = vpop.f32.mrf.mxu0
        %v1442 = vadd.f32 0.0, %v1441
        %v1443 = vpop.f32.mrf.mxu0
        %v1444 = vpop.f32.mrf.mxu0
        %v1445 = vadd.f32 0.0, %v1444
        %v1446 = vpop.f32.mrf.mxu0
        %1447 = vmatprep.mubr.bf16.mxu0 0
        %1448 = vmatmul.mubr.bf16.gmra.mxu0 %v631
        %v1449 = vpop.f32.mrf.mxu0
        %v1450 = vadd.f32 0.0, %v1449
        %v1451 = vpop.f32.mrf.mxu0
        %v1452 = vpop.f32.mrf.mxu0
        %v1453 = vadd.f32 0.0, %v1452
        %v1454 = vpop.f32.mrf.mxu0
        %1455 = vmatprep.mubr.bf16.mxu0 0
        %1456 = vmatmul.mubr.bf16.gmra.mxu0 %v634
        %v1457 = vpop.f32.mrf.mxu0
        %v1458 = vadd.f32 0.0, %v1457
        %v1459 = vpop.f32.mrf.mxu0
        %v1460 = vpop.f32.mrf.mxu0
        %v1461 = vadd.f32 0.0, %v1460
        %v1462 = vpop.f32.mrf.mxu0
        %1463 = vmatprep.mubr.bf16.mxu0 0
        %1464 = vmatmul.mubr.bf16.gmra.mxu0 %v637
        %v1465 = vpop.f32.mrf.mxu0
        %v1466 = vadd.f32 0.0, %v1465
        %v1467 = vpop.f32.mrf.mxu0
        %v1468 = vpop.f32.mrf.mxu0
        %v1469 = vadd.f32 0.0, %v1468
        %v1470 = vpop.f32.mrf.mxu0
        %1471 = vmatprep.mubr.bf16.mxu0 0
        %1472 = vmatmul.mubr.bf16.gmra.mxu0 %v980
        %v1473 = vpop.f32.mrf.mxu0
        %v1474 = vadd.f32 0.0, %v1473
        %v1475 = vpop.f32.mrf.mxu0
        %v1476 = vpop.f32.mrf.mxu0
        %v1477 = vadd.f32 0.0, %v1476
        %v1478 = vpop.f32.mrf.mxu0
        %1479 = vmatprep.mubr.bf16.mxu0 0
        %1480 = vmatmul.mubr.bf16.gmra.mxu0 %v1386
        %v1481 = vpop.f32.mrf.mxu0
        %v1482 = vadd.f32 0.0, %v1481
        %v1483 = vpop.f32.mrf.mxu0
        %v1484 = vpop.f32.mrf.mxu0
        %v1485 = vadd.f32 0.0, %v1484
        %v1486 = vpop.f32.mrf.mxu0
        %1487 = vdwg.mxu0
        %v1488 = vadd.f32 %v1362, %v1426
        %v1489 = vadd.f32 %v1363, %v1429
        %v1490 = vadd.f32 %v1364, %v1434
        %v1491 = vadd.f32 %v1365, %v1437
        %v1492 = vadd.f32 %v1366, %v1442
        %v1493 = vadd.f32 %v1367, %v1445
        %v1494 = vadd.f32 %v1368, %v1450
        %v1495 = vadd.f32 %v1369, %v1453
        %v1496 = vadd.f32 %v1370, %v1458
        %v1497 = vadd.f32 %v1371, %v1461
        %v1498 = vadd.f32 %v1372, %v1466
        %v1499 = vadd.f32 %v1373, %v1469
        %v1500 = vadd.f32 %v1374, %v1474
        %v1501 = vadd.f32 %v1375, %v1477
        %v1502 = vadd.f32 %v1376, %v1482
        %v1503 = vadd.f32 %v1377, %v1485
        %v1505 = vshrl.u32 %v224, 16
        %v1507 = vrot.slane %v1505, 4
        %v1508 = vshll.u32 %v224, 16
        %v1510 = vrot.slane %v1508, 5
        %v1511 = vor.u32 %v1507, %v1510
        %v1512 = vrot.slane %v1511, 4
        %v1514 = vshll.u32 %v225, 16
        %v1516 = vrot.slane %v1514, 5
        %v1517 = vsel %vm230, %v1512, %v1516
        %v1518 = vshrl.u32 %v225, 16
        %v1520 = vrot.slane %v1518, 4
        %v1521 = vor.u32 %v1520, %v1516
        %v1522 = vrot.slane %v1521, 4
        %v1524 = vshll.u32 %v226, 16
        %v1526 = vrot.slane %v1524, 5
        %v1527 = vsel %vm230, %v1522, %v1526
        %s1528 = scalar_lea.vmem %s1, 28
        %v1529 = vld [vmem:[%s1528] sm:$0xf]
        %v1530 = vunpack.c.l.b16 %v1517
        %v1531 = vunpack.c.l.b16 %v1527
        %v1532 = vpack.c.b16 %v1531, %v1530
        %v1534 = vsel %vm449, %v1532, 0
        %v1537 = vsel %vm474, %v1529, 0
        %1539 = vmatprep.subr.bf16.mxu0 0
        %1540 = vmatpush1.bf16.msra.mxu0 0
        %1541 = vmatprep.subr.bf16.mxu0 0
        %1542 = vmatpush1.bf16.msra.mxu0 0
        %1543 = vmatprep.subr.bf16.mxu0 0
        %1544 = vmatpush1.bf16.msra.mxu0 0
        %1545 = vmatprep.subr.bf16.mxu0 0
        %1546 = vmatpush1.bf16.msra.mxu0 0
        %1547 = vmatprep.subr.bf16.mxu0 0
        %1548 = vmatpush1.bf16.msra.mxu0 0
        %1549 = vmatprep.subr.bf16.mxu0 0
        %1550 = vmatpush1.bf16.msra.mxu0 0
        %1551 = vmatprep.subr.bf16.mxu0 0
        %1552 = vmatpush1.bf16.msra.mxu0 0
        %1553 = vmatprep.subr.bf16.mxu0 0
        %1554 = vmatpush1.bf16.msra.mxu0 %v1537
        %1555 = vmatprep.subr.bf16.mxu0 0
        %1556 = vmatpush2.bf16.msra.mxu0 0
        %1557 = vmatprep.subr.bf16.mxu0 0
        %1558 = vmatpush2.bf16.msra.mxu0 0
        %1559 = vmatprep.subr.bf16.mxu0 0
        %1560 = vmatpush2.bf16.msra.mxu0 0
        %1561 = vmatprep.subr.bf16.mxu0 0
        %1562 = vmatpush2.bf16.msra.mxu0 0
        %1563 = vmatprep.subr.bf16.mxu0 0
        %1564 = vmatpush2.bf16.msra.mxu0 0
        %1565 = vmatprep.subr.bf16.mxu0 0
        %1566 = vmatpush2.bf16.msra.mxu0 0
        %1567 = vmatprep.subr.bf16.mxu0 0
        %1568 = vmatpush2.bf16.msra.mxu0 0
        %1569 = vmatprep.subr.bf16.mxu0 0
        %1570 = vmatpush2.bf16.msra.mxu0 0
        %1571 = vmatprep.mubr.bf16.mxu0 0
        %1572 = vmatmul.mubr.bf16.gmra.mxu0 %v457
        %v1573 = vpop.f32.mrf.mxu0
        %v1574 = vadd.f32 0.0, %v1573
        %v1575 = vpop.f32.mrf.mxu0
        %v1576 = vpop.f32.mrf.mxu0
        %v1577 = vadd.f32 0.0, %v1576
        %v1578 = vpop.f32.mrf.mxu0
        %1579 = vmatprep.mubr.bf16.mxu0 0
        %1580 = vmatmul.mubr.bf16.gmra.mxu0 %v460
        %v1581 = vpop.f32.mrf.mxu0
        %v1582 = vadd.f32 0.0, %v1581
        %v1583 = vpop.f32.mrf.mxu0
        %v1584 = vpop.f32.mrf.mxu0
        %v1585 = vadd.f32 0.0, %v1584
        %v1586 = vpop.f32.mrf.mxu0
        %1587 = vmatprep.mubr.bf16.mxu0 0
        %1588 = vmatmul.mubr.bf16.gmra.mxu0 %v463
        %v1589 = vpop.f32.mrf.mxu0
        %v1590 = vadd.f32 0.0, %v1589
        %v1591 = vpop.f32.mrf.mxu0
        %v1592 = vpop.f32.mrf.mxu0
        %v1593 = vadd.f32 0.0, %v1592
        %v1594 = vpop.f32.mrf.mxu0
        %1595 = vmatprep.mubr.bf16.mxu0 0
        %1596 = vmatmul.mubr.bf16.gmra.mxu0 %v466
        %v1597 = vpop.f32.mrf.mxu0
        %v1598 = vadd.f32 0.0, %v1597
        %v1599 = vpop.f32.mrf.mxu0
        %v1600 = vpop.f32.mrf.mxu0
        %v1601 = vadd.f32 0.0, %v1600
        %v1602 = vpop.f32.mrf.mxu0
        %1603 = vmatprep.mubr.bf16.mxu0 0
        %1604 = vmatmul.mubr.bf16.gmra.mxu0 %v469
        %v1605 = vpop.f32.mrf.mxu0
        %v1606 = vadd.f32 0.0, %v1605
        %v1607 = vpop.f32.mrf.mxu0
        %v1608 = vpop.f32.mrf.mxu0
        %v1609 = vadd.f32 0.0, %v1608
        %v1610 = vpop.f32.mrf.mxu0
        %1611 = vmatprep.mubr.bf16.mxu0 0
        %1612 = vmatmul.mubr.bf16.gmra.mxu0 %v472
        %v1613 = vpop.f32.mrf.mxu0
        %v1614 = vadd.f32 0.0, %v1613
        %v1615 = vpop.f32.mrf.mxu0
        %v1616 = vpop.f32.mrf.mxu0
        %v1617 = vadd.f32 0.0, %v1616
        %v1618 = vpop.f32.mrf.mxu0
        %1619 = vmatprep.mubr.bf16.mxu0 0
        %1620 = vmatmul.mubr.bf16.gmra.mxu0 %v1128
        %v1621 = vpop.f32.mrf.mxu0
        %v1622 = vadd.f32 0.0, %v1621
        %v1623 = vpop.f32.mrf.mxu0
        %v1624 = vpop.f32.mrf.mxu0
        %v1625 = vadd.f32 0.0, %v1624
        %v1626 = vpop.f32.mrf.mxu0
        %1627 = vmatprep.mubr.bf16.mxu0 0
        %1628 = vmatmul.mubr.bf16.gmra.mxu0 %v1534
        %v1629 = vpop.f32.mrf.mxu0
        %v1630 = vadd.f32 0.0, %v1629
        %v1631 = vpop.f32.mrf.mxu0
        %v1632 = vpop.f32.mrf.mxu0
        %v1633 = vadd.f32 0.0, %v1632
        %v1634 = vpop.f32.mrf.mxu0
        %1635 = vdwg.mxu0
        %v1636 = vadd.f32 %v1488, %v1574
        %v1637 = vadd.f32 %v1489, %v1577
        %v1638 = vadd.f32 %v1490, %v1582
        %v1639 = vadd.f32 %v1491, %v1585
        %v1640 = vadd.f32 %v1492, %v1590
        %v1641 = vadd.f32 %v1493, %v1593
        %v1642 = vadd.f32 %v1494, %v1598
        %v1643 = vadd.f32 %v1495, %v1601
        %v1644 = vadd.f32 %v1496, %v1606
        %v1645 = vadd.f32 %v1497, %v1609
        %v1646 = vadd.f32 %v1498, %v1614
        %v1647 = vadd.f32 %v1499, %v1617
        %v1648 = vadd.f32 %v1500, %v1622
        %v1649 = vadd.f32 %v1501, %v1625
        %v1650 = vadd.f32 %v1502, %v1630
        %v1651 = vadd.f32 %v1503, %v1633
        %v1653 = vrot.slane %v224, 5
        %v1654 = vrot.slane %v1653, 4
        %v1655 = vrot.slane %v225, 5
        %v1656 = vsel %vm749, %v1654, %v1655
        %v1657 = vrot.slane %v1655, 4
        %v1658 = vrot.slane %v226, 5
        %v1659 = vsel %vm749, %v1657, %v1658
        %s1660 = scalar_lea.vmem %s1, 32
        %v1661 = vld [vmem:[%s1660] sm:$0xf]
        %v1662 = vunpack.c.l.b16 %v1656
        %v1663 = vunpack.c.l.b16 %v1659
        %v1664 = vpack.c.b16 %v1663, %v1662
        %v1666 = vsel %vm449, %v1664, 0
        %v1669 = vsel %vm474, %v1661, 0
        %1671 = vmatprep.subr.bf16.mxu0 0
        %1672 = vmatpush1.bf16.msra.mxu0 0
        %1673 = vmatprep.subr.bf16.mxu0 0
        %1674 = vmatpush1.bf16.msra.mxu0 0
        %1675 = vmatprep.subr.bf16.mxu0 0
        %1676 = vmatpush1.bf16.msra.mxu0 0
        %1677 = vmatprep.subr.bf16.mxu0 0
        %1678 = vmatpush1.bf16.msra.mxu0 0
        %1679 = vmatprep.subr.bf16.mxu0 0
        %1680 = vmatpush1.bf16.msra.mxu0 0
        %1681 = vmatprep.subr.bf16.mxu0 0
        %1682 = vmatpush1.bf16.msra.mxu0 0
        %1683 = vmatprep.subr.bf16.mxu0 0
        %1684 = vmatpush1.bf16.msra.mxu0 0
        %1685 = vmatprep.subr.bf16.mxu0 0
        %1686 = vmatpush1.bf16.msra.mxu0 %v1669
        %1687 = vmatprep.subr.bf16.mxu0 0
        %1688 = vmatpush2.bf16.msra.mxu0 0
        %1689 = vmatprep.subr.bf16.mxu0 0
        %1690 = vmatpush2.bf16.msra.mxu0 0
        %1691 = vmatprep.subr.bf16.mxu0 0
        %1692 = vmatpush2.bf16.msra.mxu0 0
        %1693 = vmatprep.subr.bf16.mxu0 0
        %1694 = vmatpush2.bf16.msra.mxu0 0
        %1695 = vmatprep.subr.bf16.mxu0 0
        %1696 = vmatpush2.bf16.msra.mxu0 0
        %1697 = vmatprep.subr.bf16.mxu0 0
        %1698 = vmatpush2.bf16.msra.mxu0 0
        %1699 = vmatprep.subr.bf16.mxu0 0
        %1700 = vmatpush2.bf16.msra.mxu0 0
        %1701 = vmatprep.subr.bf16.mxu0 0
        %1702 = vmatpush2.bf16.msra.mxu0 0
        %1703 = vmatprep.mubr.bf16.mxu0 0
        %1704 = vmatmul.mubr.bf16.gmra.mxu0 %v839
        %v1705 = vpop.f32.mrf.mxu0
        %v1706 = vadd.f32 0.0, %v1705
        %v1707 = vpop.f32.mrf.mxu0
        %v1708 = vpop.f32.mrf.mxu0
        %v1709 = vadd.f32 0.0, %v1708
        %v1710 = vpop.f32.mrf.mxu0
        %1711 = vmatprep.mubr.bf16.mxu0 0
        %1712 = vmatmul.mubr.bf16.gmra.mxu0 %v842
        %v1713 = vpop.f32.mrf.mxu0
        %v1714 = vadd.f32 0.0, %v1713
        %v1715 = vpop.f32.mrf.mxu0
        %v1716 = vpop.f32.mrf.mxu0
        %v1717 = vadd.f32 0.0, %v1716
        %v1718 = vpop.f32.mrf.mxu0
        %1719 = vmatprep.mubr.bf16.mxu0 0
        %1720 = vmatmul.mubr.bf16.gmra.mxu0 %v845
        %v1721 = vpop.f32.mrf.mxu0
        %v1722 = vadd.f32 0.0, %v1721
        %v1723 = vpop.f32.mrf.mxu0
        %v1724 = vpop.f32.mrf.mxu0
        %v1725 = vadd.f32 0.0, %v1724
        %v1726 = vpop.f32.mrf.mxu0
        %1727 = vmatprep.mubr.bf16.mxu0 0
        %1728 = vmatmul.mubr.bf16.gmra.mxu0 %v848
        %v1729 = vpop.f32.mrf.mxu0
        %v1730 = vadd.f32 0.0, %v1729
        %v1731 = vpop.f32.mrf.mxu0
        %v1732 = vpop.f32.mrf.mxu0
        %v1733 = vadd.f32 0.0, %v1732
        %v1734 = vpop.f32.mrf.mxu0
        %1735 = vmatprep.mubr.bf16.mxu0 0
        %1736 = vmatmul.mubr.bf16.gmra.mxu0 %v851
        %v1737 = vpop.f32.mrf.mxu0
        %v1738 = vadd.f32 0.0, %v1737
        %v1739 = vpop.f32.mrf.mxu0
        %v1740 = vpop.f32.mrf.mxu0
        %v1741 = vadd.f32 0.0, %v1740
        %v1742 = vpop.f32.mrf.mxu0
        %1743 = vmatprep.mubr.bf16.mxu0 0
        %1744 = vmatmul.mubr.bf16.gmra.mxu0 %v854
        %v1745 = vpop.f32.mrf.mxu0
        %v1746 = vadd.f32 0.0, %v1745
        %v1747 = vpop.f32.mrf.mxu0
        %v1748 = vpop.f32.mrf.mxu0
        %v1749 = vadd.f32 0.0, %v1748
        %v1750 = vpop.f32.mrf.mxu0
        %1751 = vmatprep.mubr.bf16.mxu0 0
        %1752 = vmatmul.mubr.bf16.gmra.mxu0 %v1260
        %v1753 = vpop.f32.mrf.mxu0
        %v1754 = vadd.f32 0.0, %v1753
        %v1755 = vpop.f32.mrf.mxu0
        %v1756 = vpop.f32.mrf.mxu0
        %v1757 = vadd.f32 0.0, %v1756
        %v1758 = vpop.f32.mrf.mxu0
        %1759 = vmatprep.mubr.bf16.mxu0 0
        %1760 = vmatmul.mubr.bf16.gmra.mxu0 %v1666
        %v1761 = vpop.f32.mrf.mxu0
        %v1762 = vadd.f32 0.0, %v1761
        %v1763 = vpop.f32.mrf.mxu0
        %v1764 = vpop.f32.mrf.mxu0
        %v1765 = vadd.f32 0.0, %v1764
        %v1766 = vpop.f32.mrf.mxu0
        %1767 = vdwg.mxu0
        %v1768 = vadd.f32 %v1636, %v1706
        %v1769 = vadd.f32 %v1637, %v1709
        %v1770 = vadd.f32 %v1638, %v1714
        %v1771 = vadd.f32 %v1639, %v1717
        %v1772 = vadd.f32 %v1640, %v1722
        %v1773 = vadd.f32 %v1641, %v1725
        %v1774 = vadd.f32 %v1642, %v1730
        %v1775 = vadd.f32 %v1643, %v1733
        %v1776 = vadd.f32 %v1644, %v1738
        %v1777 = vadd.f32 %v1645, %v1741
        %v1778 = vadd.f32 %v1646, %v1746
        %v1779 = vadd.f32 %v1647, %v1749
        %v1780 = vadd.f32 %v1648, %v1754
        %v1781 = vadd.f32 %v1649, %v1757
        %v1782 = vadd.f32 %v1650, %v1762
        %v1783 = vadd.f32 %v1651, %v1765
        %v1784 = vld [vmem:[%s2] sm:$0x1]
        %v1786 = vlaneseq
        %v1787 = vshrl.u32 %v1786, 7
        %v1788 = vsub.s32 0, %v1787
        %v1789 = vrot.slane %v1784, %v1788
        %v1791 = vmul.f32 %v1768, %v1789
        %v1792 = vmul.f32 %v1769, %v1789
        %v1793 = vmul.f32 %v1770, %v1789
        %v1794 = vmul.f32 %v1771, %v1789
        %v1795 = vmul.f32 %v1772, %v1789
        %v1796 = vmul.f32 %v1773, %v1789
        %v1797 = vmul.f32 %v1774, %v1789
        %v1798 = vmul.f32 %v1775, %v1789
        %v1799 = vmul.f32 %v1776, %v1789
        %v1800 = vmul.f32 %v1777, %v1789
        %v1801 = vmul.f32 %v1778, %v1789
        %v1802 = vmul.f32 %v1779, %v1789
        %v1803 = vmul.f32 %v1780, %v1789
        %v1804 = vmul.f32 %v1781, %v1789
        %v1805 = vmul.f32 %v1782, %v1789
        %v1806 = vmul.f32 %v1783, %v1789
        %v1807 = vld [vmem:[%s3] sm:$0x1]
        %v1809 = vlaneseq
        %v1810 = vshrl.u32 %v1809, 7
        %v1811 = vsub.s32 0, %v1810
        %v1812 = vrot.slane %v1807, %v1811
        %v1814 = vadd.f32 %v1791, %v1812
        %v1815 = vadd.f32 %v1792, %v1812
        %v1816 = vadd.f32 %v1793, %v1812
        %v1817 = vadd.f32 %v1794, %v1812
        %v1818 = vadd.f32 %v1795, %v1812
        %v1819 = vadd.f32 %v1796, %v1812
        %v1820 = vadd.f32 %v1797, %v1812
        %v1821 = vadd.f32 %v1798, %v1812
        %v1822 = vadd.f32 %v1799, %v1812
        %v1823 = vadd.f32 %v1800, %v1812
        %v1824 = vadd.f32 %v1801, %v1812
        %v1825 = vadd.f32 %v1802, %v1812
        %v1826 = vadd.f32 %v1803, %v1812
        %v1827 = vadd.f32 %v1804, %v1812
        %v1828 = vadd.f32 %v1805, %v1812
        %v1829 = vadd.f32 %v1806, %v1812
        %v1830 = vmax.f32 %v1814, 0.0
        %v1831 = vmax.f32 %v1815, 0.0
        %v1832 = vmax.f32 %v1816, 0.0
        %v1833 = vmax.f32 %v1817, 0.0
        %v1834 = vmax.f32 %v1818, 0.0
        %v1835 = vmax.f32 %v1819, 0.0
        %v1836 = vmax.f32 %v1820, 0.0
        %v1837 = vmax.f32 %v1821, 0.0
        %v1838 = vmax.f32 %v1822, 0.0
        %v1839 = vmax.f32 %v1823, 0.0
        %v1840 = vmax.f32 %v1824, 0.0
        %v1841 = vmax.f32 %v1825, 0.0
        %v1842 = vmax.f32 %v1826, 0.0
        %v1843 = vmax.f32 %v1827, 0.0
        %v1844 = vmax.f32 %v1828, 0.0
        %v1845 = vmax.f32 %v1829, 0.0
        %v1846 = vpack.c.bf16 %v1831, %v1830
        %v1847 = vpack.c.bf16 %v1833, %v1832
        %v1848 = vpack.c.bf16 %v1835, %v1834
        %v1849 = vpack.c.bf16 %v1837, %v1836
        %v1850 = vpack.c.bf16 %v1839, %v1838
        %v1851 = vpack.c.bf16 %v1841, %v1840
        %v1852 = vpack.c.bf16 %v1843, %v1842
        %v1853 = vpack.c.bf16 %v1845, %v1844
        %v1862 = vunpack.c.l.b16 %v1846
        %v1863 = vunpack.c.h.b16 %v1846
        %v1864 = vunpack.c.l.b16 %v1847
        %v1865 = vunpack.c.h.b16 %v1847
        %v1866 = vunpack.c.l.b16 %v1848
        %v1867 = vunpack.c.h.b16 %v1848
        %v1868 = vunpack.c.l.b16 %v1849
        %v1869 = vunpack.c.h.b16 %v1849
        %v1870 = vunpack.c.l.b16 %v1850
        %v1871 = vunpack.c.h.b16 %v1850
        %v1872 = vunpack.c.l.b16 %v1851
        %v1873 = vunpack.c.h.b16 %v1851
        %v1874 = vunpack.c.l.b16 %v1852
        %v1875 = vunpack.c.h.b16 %v1852
        %v1876 = vunpack.c.l.b16 %v1853
        %v1877 = vunpack.c.h.b16 %v1853
        %v1878 = vpack.c.b16 %v1862, %v1862
        %v1879 = vpack.c.b16 %v1863, %v1863
        %v1880 = vpack.c.b16 %v1864, %v1864
        %v1881 = vpack.c.b16 %v1865, %v1865
        %v1882 = vpack.c.b16 %v1866, %v1866
        %v1883 = vpack.c.b16 %v1867, %v1867
        %v1884 = vpack.c.b16 %v1868, %v1868
        %v1885 = vpack.c.b16 %v1869, %v1869
        %v1886 = vpack.c.b16 %v1870, %v1870
        %v1887 = vpack.c.b16 %v1871, %v1871
        %v1888 = vpack.c.b16 %v1872, %v1872
        %v1889 = vpack.c.b16 %v1873, %v1873
        %v1890 = vpack.c.b16 %v1874, %v1874
        %v1891 = vpack.c.b16 %v1875, %v1875
        %v1892 = vpack.c.b16 %v1876, %v1876
        %v1893 = vpack.c.b16 %v1877, %v1877
        %vm1910 = vcmask 125952
        %1911 = vst.msk [vmem:[%s190] sm:$0xf] %vm1910, %v1878
        %1912 = vst.msk [vmem:[%s190 + $0x4] sm:$0xf] %vm1910, %v1879
        %1913 = vst.msk [vmem:[%s190 + $0x8] sm:$0xf] %vm1910, %v1880
        %1914 = vst.msk [vmem:[%s190 + $0xc] sm:$0xf] %vm1910, %v1881
        %1915 = vst.msk [vmem:[%s190 + $0x10] sm:$0xf] %vm1910, %v1882
        %1916 = vst.msk [vmem:[%s190 + $0x14] sm:$0xf] %vm1910, %v1883
        %1917 = vst.msk [vmem:[%s190 + $0x18] sm:$0xf] %vm1910, %v1884
        %1918 = vst.msk [vmem:[%s190 + $0x1c] sm:$0xf] %vm1910, %v1885
        %1919 = vst.msk [vmem:[%s190 + $0x20] sm:$0xf] %vm1910, %v1886
        %1920 = vst.msk [vmem:[%s190 + $0x24] sm:$0xf] %vm1910, %v1887
        %1921 = vst.msk [vmem:[%s190 + $0x28] sm:$0xf] %vm1910, %v1888
        %1922 = vst.msk [vmem:[%s190 + $0x2c] sm:$0xf] %vm1910, %v1889
        %1923 = vst.msk [vmem:[%s190 + $0x30] sm:$0xf] %vm1910, %v1890
        %1924 = vst.msk [vmem:[%s190 + $0x34] sm:$0xf] %vm1910, %v1891
        %1925 = vst.msk [vmem:[%s190 + $0x38] sm:$0xf] %vm1910, %v1892
        %1926 = vst.msk [vmem:[%s190 + $0x3c] sm:$0xf] %vm1910, %v1893
        %s1927 = sand.u32 %s115, 1
        %s1928 = scalar_lea.sflag [#allocation3], %s1927
        %s1929 = sand.u32 %s115, 1
        %s1930 = smul.addr %s1929, 64
        %s1931 = scalar_lea.vmem [#allocation2], %s1930
        // Predicated region
        $region37: #{tpu_custom_call.1} parent=35 // pred_check
          %p1932 = pneg %p125
        $region38: #{tpu_custom_call.1} parent=35 // pred_check_branch
          %1934 = sbr.rel (%p1932) target = $region40
        $region39: #{tpu_custom_call.1} parent=35 // pred_region
          %s1936 = ssub.s32 1024, 1024
          %1937 = vsyncadd %s1928, %s1936
          %s1938 = smul.addr %s18, 16
          %s1939 = smul.addr %s1938, 64
          %s1940 = scalar_lea.hbm %s4, %s1939
          %s1941 = sshll.u32 %s1931, 4
          %s1942 = int_to_ptr.vmem [resolvable:$true] %s1941
          %1947 = dma.vmem_to_hbm [thread:$0]  %s1942, 1024, %s1940, %s1928, 64, 64, 4
        $region40: #{tpu_custom_call.1} parent=35 // pred_fallthru
          _
      $region36: #{tpu_custom_call.1} parent=5 // pred_fallthru
        _
      %p1948 = scmp.le.s32.totalorder 2, %s13
      // Predicated region
      $region41: #{tpu_custom_call.1} parent=5 // pred_check
        %p1949 = pneg %p1948
      $region42: #{tpu_custom_call.1} parent=5 // pred_check_branch
        %1951 = sbr.rel (%p1949) target = $region44
      $region43: #{tpu_custom_call.1} parent=5 // pred_region
        %s1952 = ssub.s32 %s13, 2
        // Predicated region
        $region45: #{tpu_custom_call.1} parent=43 // pred_check
          %p1953 = pneg %p131
        $region46: #{tpu_custom_call.1} parent=43 // pred_check_branch
          %1955 = sbr.rel (%p1953) target = $region48
        $region47: #{tpu_custom_call.1} parent=43 // pred_region
          %s1956 = sand.u32 %s116, 1
          %s1957 = scalar_lea.sflag [#allocation3], %s1956
          %s1958 = sand.u32 %s116, 1
          %s1959 = smul.addr %s1958, 64
          %s1960 = scalar_lea.vmem [#allocation2], %s1959
          %1961 = dma.done %s1957, 1024
        $region48: #{tpu_custom_call.1} parent=43 // pred_fallthru
          _
      $region44: #{tpu_custom_call.1} parent=5 // pred_fallthru
        _
    $region6: #{tpu_custom_call.1} parent=1 // loop_footer
      %s17 = sadd.s32 1, %s13
    $region7: #{tpu_custom_call.1} parent=1 // loop_footer_branch
      %12 = sbr.rel target = $region3
    $region8: #{tpu_custom_call.1} parent=1 // loop_exit
      _
    %1962 = vsyncpa [#allocation3], 1
    %s1963 = scalar_lea.sflag [#allocation3], 1
    %1964 = vsyncpa %s1963, 1

</llo_original>
